<compile_context>
chip_gen: v7x
topology: tpu7x:2x2x1
jax: 0.10.0
libtpu: 0.0.40
codegen_flags: <defaults>
</compile_context>

<pallas_src>
import math

import jax
import jax.numpy as jnp
from jax.experimental import pallas as pl
from jax.experimental.pallas import tpu as pltpu


def _layernorm(x, gamma, beta, eps=1e-5):
    # PyTorch nn.LayerNorm over last dim (biased variance, eps=1e-5).
    mu = jnp.mean(x, axis=-1, keepdims=True)
    var = jnp.mean((x - mu) ** 2, axis=-1, keepdims=True)
    return (x - mu) * jax.lax.rsqrt(var + eps) * gamma + beta


def _make_mab_kernel(num_heads, dim_V, ln, Bt, Nq, Nk, dim_Q, dim_K, matmul_dtype):
    ds = dim_V // num_heads
    scale = 1.0 / math.sqrt(dim_V)  # torch scales by sqrt(dim_V), not head_dim
    cdt = matmul_dtype

    def kernel(q_ref, k_ref, v_ref,
               wq_ref, bq_ref, wk_ref, bk_ref, wv_ref, bv_ref, wo_ref, bo_ref,
               *rest):
        if ln:
            g0_ref, be0_ref, g1_ref, be1_ref, o_ref = rest
        else:
            (o_ref,) = rest

        # Fold the batch tile into the matmul M dimension (leading-dim merge only;
        # the minor/lane dim never changes in any in-kernel reshape).
        q2 = q_ref[...].reshape(Bt * Nq, dim_Q).astype(cdt)
        k2 = k_ref[...].reshape(Bt * Nk, dim_K).astype(cdt)
        v2 = v_ref[...].reshape(Bt * Nk, dim_K).astype(cdt)

        def mm(a, w_ref):
            # Weights already arrive in the MXU operand dtype (pre-cast in wrapper);
            # accumulate in f32 on the MXU.
            return jnp.dot(a, w_ref[...], preferred_element_type=jnp.float32)

        # Input projections on (Bt*N, dim) row slabs.
        Qp = mm(q2, wq_ref) + bq_ref[...]
        Kp = (mm(k2, wk_ref) + bk_ref[...]) * scale   # softmax scale folded once
        Vp = mm(v2, wv_ref) + bv_ref[...]

        Q3 = Qp.reshape(Bt, Nq, dim_V)
        K3 = Kp.reshape(Bt, Nk, dim_V)
        V3 = Vp.reshape(Bt, Nk, dim_V)

        # Multi-head attention: static head loop, 3D einsums batched over Bt.
        # Contexts are kept in vregs and concatenated once along the lane dim
        # (no scratch slab, no masked lane-offset stores, no read-back).
        ctxs = []
        for h in range(num_heads):
            s = h * ds
            qh = Q3[:, :, s:s + ds].astype(cdt)
            kh = K3[:, :, s:s + ds].astype(cdt)
            vh = V3[:, :, s:s + ds].astype(cdt)
            # dot_general contracting the last dim -> no explicit K^T materialized.
            logits = jnp.einsum('bqd,bkd->bqk', qh, kh,
                                preferred_element_type=jnp.float32)
            m = jnp.max(logits, axis=-1, keepdims=True)
            e = jnp.exp(logits - m)
            inv = pl.reciprocal(jnp.sum(e, axis=-1, keepdims=True), approx=True)
            a = (e * inv).astype(cdt)
            ctxs.append(jnp.einsum('bqk,bkd->bqd', a, vh,
                                   preferred_element_type=jnp.float32))
        ctx = jnp.concatenate(ctxs, axis=-1) if num_heads > 1 else ctxs[0]

        # Residual over the full-width slab (same feature order as torch cat(split)).
        O = Qp + ctx.reshape(Bt * Nq, dim_V)

        if ln:
            O = _layernorm(O, g0_ref[...], be0_ref[...])

        ffn = jnp.dot(O.astype(cdt), wo_ref[...],
                      preferred_element_type=jnp.float32) + bo_ref[...]
        O = O + jnp.maximum(ffn, 0.0)  # O + relu(fc_o(O))

        if ln:
            O = _layernorm(O, g1_ref[...], be1_ref[...])

        o_ref[...] = O.reshape(o_ref.shape).astype(o_ref.dtype)

    return kernel


def _vmem_limit_bytes():
    """~75% of physical VMEM: leaves headroom for compiler scratch / double buffers."""
    cap = None
    try:
        cap = int(pltpu.get_tpu_info().vmem_capacity_bytes)
    except Exception:
        cap = None
    if not cap:
        kind = ""
        try:
            kind = jax.devices()[0].device_kind.lower()
        except Exception:
            pass
        cap = 64 * 1024 * 1024 if "v7" in kind else 128 * 1024 * 1024
    return int(0.75 * cap)


def _auto_matmul_dtype():
    """bf16 MXU operands on v6e/v7x (review default); f32 on v5-class chips."""
    kind = ""
    try:
        kind = jax.devices()[0].device_kind.lower()
    except Exception:
        pass
    if "v6" in kind or "v7" in kind:
        return jnp.bfloat16
    return jnp.float32


def _est_vmem_bytes(bt, Nq, Nk, dim_q, dim_k, dim_v, in_itemsize, w_itemsize):
    # Double-buffered activation tiles (Q, K, V in; out).
    io = 2 * in_itemsize * bt * (Nq * dim_q + 2 * Nk * dim_k + Nq * dim_v)
    # f32 projected Q/K/V + residual / ffn slabs.
    inter = 4 * bt * ((Nq + 2 * Nk) * dim_v + 3 * Nq * dim_v)
    # Per-head logits + probabilities (heads processed serially).
    attn = 2 * 4 * bt * Nq * Nk
    # Single-buffered weights + biases / LN params.
    w = w_itemsize * (dim_q + 2 * dim_k + dim_v) * dim_v + 4 * 8 * dim_v
    return io + inter + attn + w


def _pick_batch_tile(B, Nq, Nk, dim_q, dim_k, dim_v, *, in_itemsize, w_itemsize,
                     vmem_budget, target_rows):
    """Largest divisor of B that fits the row target and the VMEM budget while
    keeping grid >= 2 whenever B >= 2 (so both v7x TensorCores get work)."""
    nmax = max(Nq, Nk)
    max_bt = B if B < 2 else B // 2
    best = 1
    for bt in range(1, max_bt + 1):
        if B % bt:
            continue
        if bt * nmax > max(target_rows, nmax):
            continue
        if _est_vmem_bytes(bt, Nq, Nk, dim_q, dim_k, dim_v,
                           in_itemsize, w_itemsize) > vmem_budget:
            continue
        best = bt
    return best


def mab_forward(params, K, V, Q, *, num_heads, ln=False, matmul_dtype=None):
    """Pallas implementation of MAB.forward(K, V, Q)."""
    two_dim = (K.ndim == 2)
    if two_dim:
        K, V, Q = K[None], V[None], Q[None]
    B, Nk, dim_K = K.shape
    _, Nq, dim_Q = Q.shape
    dim_V = params["wq"].shape[1]

    if matmul_dtype is None:
        matmul_dtype = _auto_matmul_dtype()

    vmem_limit = _vmem_limit_bytes()
    # Generation-aware row target: smaller on v7x-class (64 MiB VMEM) parts.
    target_rows = 512 if vmem_limit < 64 * 1024 * 1024 else 1024

    w_itemsize = jnp.dtype(matmul_dtype).itemsize
    in_itemsize = jnp.dtype(Q.dtype).itemsize
    Bt = _pick_batch_tile(B, Nq, Nk, dim_Q, dim_K, dim_V,
                          in_itemsize=in_itemsize, w_itemsize=w_itemsize,
                          vmem_budget=int(0.6 * vmem_limit),
                          target_rows=target_rows)

    kernel = _make_mab_kernel(num_heads, dim_V, ln, Bt, Nq, Nk,
                              dim_Q, dim_K, matmul_dtype)

    # Pre-cast weight matrices once in the wrapper (biases stay f32 for f32 accum).
    wq = params["wq"].astype(matmul_dtype)
    wk = params["wk"].astype(matmul_dtype)
    wv = params["wv"].astype(matmul_dtype)
    wo = params["wo"].astype(matmul_dtype)

    def seq_spec(n, d):
        return pl.BlockSpec((Bt, n, d), lambda b: (b, 0, 0))

    def w_spec(shape):
        nd = len(shape)
        # Constant-index operand: single-buffered (no double-buffer for weights).
        return pl.BlockSpec(shape, (lambda b: (0,) * nd),
                            pipeline_mode=pl.Buffered(1))

    in_specs = [
        seq_spec(Nq, dim_Q),                         # Q
        seq_spec(Nk, dim_K),                         # K
        seq_spec(Nk, dim_K),                         # V
        w_spec((dim_Q, dim_V)), w_spec((1, dim_V)),  # fc_q
        w_spec((dim_K, dim_V)), w_spec((1, dim_V)),  # fc_k
        w_spec((dim_K, dim_V)), w_spec((1, dim_V)),  # fc_v
        w_spec((dim_V, dim_V)), w_spec((1, dim_V)),  # fc_o
    ]
    args = [Q, K, V,
            wq, params["bq"], wk, params["bk"], wv, params["bv"],
            wo, params["bo"]]
    if ln:
        in_specs += [w_spec((1, dim_V))] * 4
        args += [params["g0"], params["be0"], params["g1"], params["be1"]]

    out = pl.pallas_call(
        kernel,
        out_shape=jax.ShapeDtypeStruct((B, Nq, dim_V), Q.dtype),
        grid_spec=pltpu.PrefetchScalarGridSpec(
            num_scalar_prefetch=0,
            grid=(B // Bt,),
            in_specs=in_specs,
            out_specs=pl.BlockSpec((Bt, Nq, dim_V), lambda b: (b, 0, 0)),
        ),
        compiler_params=pltpu.CompilerParams(
            dimension_semantics=("parallel",),
            vmem_limit_bytes=vmem_limit,
        ),
    )(*args)

    if two_dim:
        out = out[0]
    return out


def mab_reference(params, K, V, Q, *, num_heads, ln=False):
    """Pure-JAX f32 reference mirroring the torch forward exactly."""
    two_dim = (K.ndim == 2)
    if two_dim:
        K, V, Q = K[None], V[None], Q[None]
    dim_V = params["wq"].shape[1]
    Qp = Q @ params["wq"] + params["bq"][0]
    Kp = K @ params["wk"] + params["bk"][0]
    Vp = V @ params["wv"] + params["bv"][0]
    Q_ = jnp.concatenate(jnp.split(Qp, num_heads, axis=2), axis=0)
    K_ = jnp.concatenate(jnp.split(Kp, num_heads, axis=2), axis=0)
    V_ = jnp.concatenate(jnp.split(Vp, num_heads, axis=2), axis=0)
    A = jax.nn.softmax(
        jnp.einsum('bqd,bkd->bqk', Q_, K_) / math.sqrt(dim_V), axis=2)
    O = jnp.concatenate(
        jnp.split(Q_ + jnp.einsum('bqk,bkd->bqd', A, V_), num_heads, axis=0), axis=2)
    if ln:
        O = _layernorm(O, params["g0"][0], params["be0"][0])
    O = O + jax.nn.relu(O @ params["wo"] + params["bo"][0])
    if ln:
        O = _layernorm(O, params["g1"][0], params["be1"][0])
    if two_dim:
        O = O[0]
    return O


if __name__ == "__main__":
    key = jax.random.PRNGKey(0)
    dim_Q = dim_K = dim_V = 32
    num_heads = 4
    Nq, Nk = 8, 16

    ks = jax.random.split(key, 8)

    def init_linear(kw, kb, fan_in, fan_out):
        # Deterministic init mimicking nn.Linear default (uniform +-1/sqrt(fan_in)).
        bound = 1.0 / math.sqrt(fan_in)
        w = jax.random.uniform(kw, (fan_in, fan_out), jnp.float32, -bound, bound)
        b = jax.random.uniform(kb, (1, fan_out), jnp.float32, -bound, bound)
        return w, b

    wq, bq = init_linear(ks[0], ks[1], dim_Q, dim_V)
    wk, bk = init_linear(ks[2], ks[3], dim_K, dim_V)
    wv, bv = init_linear(ks[4], ks[5], dim_K, dim_V)
    wo, bo = init_linear(ks[6], ks[7], dim_V, dim_V)
    params = dict(
        wq=wq, bq=bq, wk=wk, bk=bk, wv=wv, bv=bv, wo=wo, bo=bo,
        g0=jnp.ones((1, dim_V), jnp.float32), be0=jnp.zeros((1, dim_V), jnp.float32),
        g1=jnp.ones((1, dim_V), jnp.float32), be1=jnp.zeros((1, dim_V), jnp.float32),
    )

    def make_inputs(B, salt):
        kk, kv, kq = jax.random.split(jax.random.fold_in(key, salt), 3)
        Kx = jax.random.normal(kk, (B, Nk, dim_K), jnp.float32)
        Vx = jax.random.normal(kv, (B, Nk, dim_K), jnp.float32)
        Qx = jax.random.normal(kq, (B, Nq, dim_Q), jnp.float32)
        return Kx, Vx, Qx

    def check(Kx, Vx, Qx, ln, matmul_dtype, atol, rtol, tag):
        ref = mab_reference(params, Kx, Vx, Qx, num_heads=num_heads, ln=ln)
        out = mab_forward(params, Kx, Vx, Qx, num_heads=num_heads, ln=ln,
                          matmul_dtype=matmul_dtype)
        out = jax.block_until_ready(out)
        assert out.shape == ref.shape, f"shape mismatch ({tag})"
        assert jnp.allclose(out, ref, atol=atol, rtol=rtol), f"value mismatch ({tag})"

    # B=2 (Bt=1, grid=2): f32 path (tight tolerance; only approx-reciprocal error).
    K2, V2, Q2 = make_inputs(2, 1)
    check(K2, V2, Q2, ln=False, matmul_dtype=jnp.float32, atol=5e-3, rtol=5e-3,
          tag="B2 ln=F f32")
    check(K2, V2, Q2, ln=True, matmul_dtype=jnp.float32, atol=5e-3, rtol=5e-3,
          tag="B2 ln=T f32")
    # bf16 MXU operand path (v6e/v7x throughput path): looser tolerance.
    check(K2, V2, Q2, ln=True, matmul_dtype=jnp.bfloat16, atol=1e-1, rtol=1e-1,
          tag="B2 ln=T bf16")
    # Auto matmul dtype (bf16 on v6e/v7x, f32 on v5-class): loose tolerance either way.
    check(K2, V2, Q2, ln=False, matmul_dtype=None, atol=1e-1, rtol=1e-1,
          tag="B2 ln=F auto")

    # B=8 (Bt=4, grid=2): exercises a multi-element batch tile.
    K8, V8, Q8 = make_inputs(8, 2)
    check(K8, V8, Q8, ln=False, matmul_dtype=jnp.float32, atol=5e-3, rtol=5e-3,
          tag="B8 ln=F f32")

    # 2D (unbatched) inputs, as in the torch K.dim() == 2 branch.
    check(K2[0], V2[0], Q2[0], ln=False, matmul_dtype=jnp.float32,
          atol=5e-3, rtol=5e-3, tag="2D ln=F f32")

    print("KERNEL_OK")
</pallas_src>

<mosaic_0001>
module attributes {stable_mosaic.version = 11 : i64} {
  func.func @kernel(%arg0: i32, %arg1: memref<1x8x32xf32, #tpu.memory_space<vmem>>, %arg2: memref<1x16x32xf32, #tpu.memory_space<vmem>>, %arg3: memref<1x16x32xf32, #tpu.memory_space<vmem>>, %arg4: memref<32x32xf32, #tpu.memory_space<vmem>>, %arg5: memref<1x32xf32, #tpu.memory_space<vmem>>, %arg6: memref<32x32xf32, #tpu.memory_space<vmem>>, %arg7: memref<1x32xf32, #tpu.memory_space<vmem>>, %arg8: memref<32x32xf32, #tpu.memory_space<vmem>>, %arg9: memref<1x32xf32, #tpu.memory_space<vmem>>, %arg10: memref<32x32xf32, #tpu.memory_space<vmem>>, %arg11: memref<1x32xf32, #tpu.memory_space<vmem>>, %arg12: memref<1x8x32xf32, #tpu.memory_space<vmem>>) attributes {dimension_semantics = [#tpu.dimension_semantics<parallel>], iteration_bounds = array<i64: 2>, scalar_prefetch = 0 : i64, scratch_operands = 0 : i64, tpu.core_type = #tpu.core_type<tc>, window_params = [{transform_indices = @transform_0, window_bounds = array<i64: 1, 8, 32>}, {transform_indices = @transform_1, window_bounds = array<i64: 1, 16, 32>}, {transform_indices = @transform_2, window_bounds = array<i64: 1, 16, 32>}, {pipeline_mode = #tpu.pipeline_mode<synchronous>, transform_indices = @transform_3, window_bounds = array<i64: 32, 32>}, {pipeline_mode = #tpu.pipeline_mode<synchronous>, transform_indices = @transform_4, window_bounds = array<i64: 1, 32>}, {pipeline_mode = #tpu.pipeline_mode<synchronous>, transform_indices = @transform_5, window_bounds = array<i64: 32, 32>}, {pipeline_mode = #tpu.pipeline_mode<synchronous>, transform_indices = @transform_6, window_bounds = array<i64: 1, 32>}, {pipeline_mode = #tpu.pipeline_mode<synchronous>, transform_indices = @transform_7, window_bounds = array<i64: 32, 32>}, {pipeline_mode = #tpu.pipeline_mode<synchronous>, transform_indices = @transform_8, window_bounds = array<i64: 1, 32>}, {pipeline_mode = #tpu.pipeline_mode<synchronous>, transform_indices = @transform_9, window_bounds = array<i64: 32, 32>}, {pipeline_mode = #tpu.pipeline_mode<synchronous>, transform_indices = @transform_10, window_bounds = array<i64: 1, 32>}, {transform_indices = @transform_11, window_bounds = array<i64: 1, 8, 32>}]} {
    %c0 = arith.constant 0 : index
    %c0_0 = arith.constant 0 : index
    %c0_1 = arith.constant 0 : index
    %0 = vector.load %arg1[%c0, %c0_0, %c0_1] : memref<1x8x32xf32, #tpu.memory_space<vmem>>, vector<1x8x32xf32>
    %1 = vector.shape_cast %0 : vector<1x8x32xf32> to vector<8x32xf32>
    %c0_2 = arith.constant 0 : index
    %c0_3 = arith.constant 0 : index
    %c0_4 = arith.constant 0 : index
    %2 = vector.load %arg2[%c0_2, %c0_3, %c0_4] : memref<1x16x32xf32, #tpu.memory_space<vmem>>, vector<1x16x32xf32>
    %3 = vector.shape_cast %2 : vector<1x16x32xf32> to vector<16x32xf32>
    %c0_5 = arith.constant 0 : index
    %c0_6 = arith.constant 0 : index
    %c0_7 = arith.constant 0 : index
    %4 = vector.load %arg3[%c0_5, %c0_6, %c0_7] : memref<1x16x32xf32, #tpu.memory_space<vmem>>, vector<1x16x32xf32>
    %5 = vector.shape_cast %4 : vector<1x16x32xf32> to vector<16x32xf32>
    %c0_8 = arith.constant 0 : index
    %c0_9 = arith.constant 0 : index
    %6 = vector.load %arg4[%c0_8, %c0_9] : memref<32x32xf32, #tpu.memory_space<vmem>>, vector<32x32xf32>
    %cst = arith.constant dense<0.000000e+00> : vector<8x32xf32>
    %7 = tpu.matmul %1, %6, %cst {dimension_numbers = #tpu.dot_dimension_numbers<[1], [0], [0], [1], [0, 0, 1, 1], [], []>} : vector<8x32xf32>, vector<32x32xf32>, vector<8x32xf32> -> vector<8x32xf32>
    %c0_10 = arith.constant 0 : index
    %c0_11 = arith.constant 0 : index
    %8 = vector.load %arg5[%c0_10, %c0_11] : memref<1x32xf32, #tpu.memory_space<vmem>>, vector<1x32xf32>
    %9 = vector.broadcast %8 : vector<1x32xf32> to vector<8x32xf32>
    %10 = arith.addf %7, %9 : vector<8x32xf32>
    %c0_12 = arith.constant 0 : index
    %c0_13 = arith.constant 0 : index
    %11 = vector.load %arg6[%c0_12, %c0_13] : memref<32x32xf32, #tpu.memory_space<vmem>>, vector<32x32xf32>
    %cst_14 = arith.constant dense<0.000000e+00> : vector<16x32xf32>
    %12 = tpu.matmul %3, %11, %cst_14 {dimension_numbers = #tpu.dot_dimension_numbers<[1], [0], [0], [1], [0, 0, 1, 1], [], []>} : vector<16x32xf32>, vector<32x32xf32>, vector<16x32xf32> -> vector<16x32xf32>
    %c0_15 = arith.constant 0 : index
    %c0_16 = arith.constant 0 : index
    %13 = vector.load %arg7[%c0_15, %c0_16] : memref<1x32xf32, #tpu.memory_space<vmem>>, vector<1x32xf32>
    %14 = vector.broadcast %13 : vector<1x32xf32> to vector<16x32xf32>
    %15 = arith.addf %12, %14 : vector<16x32xf32>
    %cst_17 = arith.constant 0.176776692 : f32
    %16 = vector.broadcast %cst_17 : f32 to vector<16x32xf32>
    %17 = arith.mulf %15, %16 : vector<16x32xf32>
    %c0_18 = arith.constant 0 : index
    %c0_19 = arith.constant 0 : index
    %18 = vector.load %arg8[%c0_18, %c0_19] : memref<32x32xf32, #tpu.memory_space<vmem>>, vector<32x32xf32>
    %cst_20 = arith.constant dense<0.000000e+00> : vector<16x32xf32>
    %19 = tpu.matmul %5, %18, %cst_20 {dimension_numbers = #tpu.dot_dimension_numbers<[1], [0], [0], [1], [0, 0, 1, 1], [], []>} : vector<16x32xf32>, vector<32x32xf32>, vector<16x32xf32> -> vector<16x32xf32>
    %c0_21 = arith.constant 0 : index
    %c0_22 = arith.constant 0 : index
    %20 = vector.load %arg9[%c0_21, %c0_22] : memref<1x32xf32, #tpu.memory_space<vmem>>, vector<1x32xf32>
    %21 = vector.broadcast %20 : vector<1x32xf32> to vector<16x32xf32>
    %22 = arith.addf %19, %21 : vector<16x32xf32>
    %23 = vector.shape_cast %10 : vector<8x32xf32> to vector<1x8x32xf32>
    %24 = vector.shape_cast %17 : vector<16x32xf32> to vector<1x16x32xf32>
    %25 = vector.shape_cast %22 : vector<16x32xf32> to vector<1x16x32xf32>
    %26 = vector.extract_strided_slice %23 {offsets = [0, 0, 0], sizes = [1, 8, 8], strides = [1, 1, 1]} : vector<1x8x32xf32> to vector<1x8x8xf32>
    %27 = vector.extract_strided_slice %24 {offsets = [0, 0, 0], sizes = [1, 16, 8], strides = [1, 1, 1]} : vector<1x16x32xf32> to vector<1x16x8xf32>
    %28 = vector.extract_strided_slice %25 {offsets = [0, 0, 0], sizes = [1, 16, 8], strides = [1, 1, 1]} : vector<1x16x32xf32> to vector<1x16x8xf32>
    "tpu.trace_start"() <{level = 10 : i32, message = "bqd,bkd->bqk"}> : () -> ()
    %cst_23 = arith.constant dense<0.000000e+00> : vector<1x8x16xf32>
    %29 = tpu.matmul %26, %27, %cst_23 {dimension_numbers = #tpu.dot_dimension_numbers<[2], [2], [1], [1], [0, 0, 0, 1, 1, 1], [0], [0]>} : vector<1x8x8xf32>, vector<1x16x8xf32>, vector<1x8x16xf32> -> vector<1x8x16xf32>
    "tpu.trace_stop"() : () -> ()
    %cst_24 = arith.constant dense<0xFF800000> : vector<1x8xf32>
    %30 = vector.multi_reduction <maximumf>, %29, %cst_24 [2] : vector<1x8x16xf32> to vector<1x8xf32>
    %31 = vector.shape_cast %30 : vector<1x8xf32> to vector<1x8x1xf32>
    %32 = vector.broadcast %31 : vector<1x8x1xf32> to vector<1x8x16xf32>
    %33 = arith.subf %29, %32 : vector<1x8x16xf32>
    %34 = math.exp %33 : vector<1x8x16xf32>
    %cst_25 = arith.constant dense<0.000000e+00> : vector<1x8xf32>
    %35 = vector.multi_reduction <add>, %34, %cst_25 [2] : vector<1x8x16xf32> to vector<1x8xf32>
    %36 = vector.shape_cast %35 : vector<1x8xf32> to vector<1x8x1xf32>
    %37 = tpu.reciprocal %36 {approx = true} : vector<1x8x1xf32> -> vector<1x8x1xf32>
    %38 = vector.broadcast %37 : vector<1x8x1xf32> to vector<1x8x16xf32>
    %39 = arith.mulf %34, %38 : vector<1x8x16xf32>
    "tpu.trace_start"() <{level = 10 : i32, message = "bqk,bkd->bqd"}> : () -> ()
    %cst_26 = arith.constant dense<0.000000e+00> : vector<1x8x8xf32>
    %40 = tpu.matmul %39, %28, %cst_26 {dimension_numbers = #tpu.dot_dimension_numbers<[2], [1], [1], [2], [0, 0, 0, 1, 1, 2], [0], [0]>} : vector<1x8x16xf32>, vector<1x16x8xf32>, vector<1x8x8xf32> -> vector<1x8x8xf32>
    "tpu.trace_stop"() : () -> ()
    %41 = vector.extract_strided_slice %23 {offsets = [0, 0, 8], sizes = [1, 8, 8], strides = [1, 1, 1]} : vector<1x8x32xf32> to vector<1x8x8xf32>
    %42 = vector.extract_strided_slice %24 {offsets = [0, 0, 8], sizes = [1, 16, 8], strides = [1, 1, 1]} : vector<1x16x32xf32> to vector<1x16x8xf32>
    %43 = vector.extract_strided_slice %25 {offsets = [0, 0, 8], sizes = [1, 16, 8], strides = [1, 1, 1]} : vector<1x16x32xf32> to vector<1x16x8xf32>
    "tpu.trace_start"() <{level = 10 : i32, message = "bqd,bkd->bqk"}> : () -> ()
    %cst_27 = arith.constant dense<0.000000e+00> : vector<1x8x16xf32>
    %44 = tpu.matmul %41, %42, %cst_27 {dimension_numbers = #tpu.dot_dimension_numbers<[2], [2], [1], [1], [0, 0, 0, 1, 1, 1], [0], [0]>} : vector<1x8x8xf32>, vector<1x16x8xf32>, vector<1x8x16xf32> -> vector<1x8x16xf32>
    "tpu.trace_stop"() : () -> ()
    %cst_28 = arith.constant dense<0xFF800000> : vector<1x8xf32>
    %45 = vector.multi_reduction <maximumf>, %44, %cst_28 [2] : vector<1x8x16xf32> to vector<1x8xf32>
    %46 = vector.shape_cast %45 : vector<1x8xf32> to vector<1x8x1xf32>
    %47 = vector.broadcast %46 : vector<1x8x1xf32> to vector<1x8x16xf32>
    %48 = arith.subf %44, %47 : vector<1x8x16xf32>
    %49 = math.exp %48 : vector<1x8x16xf32>
    %cst_29 = arith.constant dense<0.000000e+00> : vector<1x8xf32>
    %50 = vector.multi_reduction <add>, %49, %cst_29 [2] : vector<1x8x16xf32> to vector<1x8xf32>
    %51 = vector.shape_cast %50 : vector<1x8xf32> to vector<1x8x1xf32>
    %52 = tpu.reciprocal %51 {approx = true} : vector<1x8x1xf32> -> vector<1x8x1xf32>
    %53 = vector.broadcast %52 : vector<1x8x1xf32> to vector<1x8x16xf32>
    %54 = arith.mulf %49, %53 : vector<1x8x16xf32>
    "tpu.trace_start"() <{level = 10 : i32, message = "bqk,bkd->bqd"}> : () -> ()
    %cst_30 = arith.constant dense<0.000000e+00> : vector<1x8x8xf32>
    %55 = tpu.matmul %54, %43, %cst_30 {dimension_numbers = #tpu.dot_dimension_numbers<[2], [1], [1], [2], [0, 0, 0, 1, 1, 2], [0], [0]>} : vector<1x8x16xf32>, vector<1x16x8xf32>, vector<1x8x8xf32> -> vector<1x8x8xf32>
    "tpu.trace_stop"() : () -> ()
    %56 = vector.extract_strided_slice %23 {offsets = [0, 0, 16], sizes = [1, 8, 8], strides = [1, 1, 1]} : vector<1x8x32xf32> to vector<1x8x8xf32>
    %57 = vector.extract_strided_slice %24 {offsets = [0, 0, 16], sizes = [1, 16, 8], strides = [1, 1, 1]} : vector<1x16x32xf32> to vector<1x16x8xf32>
    %58 = vector.extract_strided_slice %25 {offsets = [0, 0, 16], sizes = [1, 16, 8], strides = [1, 1, 1]} : vector<1x16x32xf32> to vector<1x16x8xf32>
    "tpu.trace_start"() <{level = 10 : i32, message = "bqd,bkd->bqk"}> : () -> ()
    %cst_31 = arith.constant dense<0.000000e+00> : vector<1x8x16xf32>
    %59 = tpu.matmul %56, %57, %cst_31 {dimension_numbers = #tpu.dot_dimension_numbers<[2], [2], [1], [1], [0, 0, 0, 1, 1, 1], [0], [0]>} : vector<1x8x8xf32>, vector<1x16x8xf32>, vector<1x8x16xf32> -> vector<1x8x16xf32>
    "tpu.trace_stop"() : () -> ()
    %cst_32 = arith.constant dense<0xFF800000> : vector<1x8xf32>
    %60 = vector.multi_reduction <maximumf>, %59, %cst_32 [2] : vector<1x8x16xf32> to vector<1x8xf32>
    %61 = vector.shape_cast %60 : vector<1x8xf32> to vector<1x8x1xf32>
    %62 = vector.broadcast %61 : vector<1x8x1xf32> to vector<1x8x16xf32>
    %63 = arith.subf %59, %62 : vector<1x8x16xf32>
    %64 = math.exp %63 : vector<1x8x16xf32>
    %cst_33 = arith.constant dense<0.000000e+00> : vector<1x8xf32>
    %65 = vector.multi_reduction <add>, %64, %cst_33 [2] : vector<1x8x16xf32> to vector<1x8xf32>
    %66 = vector.shape_cast %65 : vector<1x8xf32> to vector<1x8x1xf32>
    %67 = tpu.reciprocal %66 {approx = true} : vector<1x8x1xf32> -> vector<1x8x1xf32>
    %68 = vector.broadcast %67 : vector<1x8x1xf32> to vector<1x8x16xf32>
    %69 = arith.mulf %64, %68 : vector<1x8x16xf32>
    "tpu.trace_start"() <{level = 10 : i32, message = "bqk,bkd->bqd"}> : () -> ()
    %cst_34 = arith.constant dense<0.000000e+00> : vector<1x8x8xf32>
    %70 = tpu.matmul %69, %58, %cst_34 {dimension_numbers = #tpu.dot_dimension_numbers<[2], [1], [1], [2], [0, 0, 0, 1, 1, 2], [0], [0]>} : vector<1x8x16xf32>, vector<1x16x8xf32>, vector<1x8x8xf32> -> vector<1x8x8xf32>
    "tpu.trace_stop"() : () -> ()
    %71 = vector.extract_strided_slice %23 {offsets = [0, 0, 24], sizes = [1, 8, 8], strides = [1, 1, 1]} : vector<1x8x32xf32> to vector<1x8x8xf32>
    %72 = vector.extract_strided_slice %24 {offsets = [0, 0, 24], sizes = [1, 16, 8], strides = [1, 1, 1]} : vector<1x16x32xf32> to vector<1x16x8xf32>
    %73 = vector.extract_strided_slice %25 {offsets = [0, 0, 24], sizes = [1, 16, 8], strides = [1, 1, 1]} : vector<1x16x32xf32> to vector<1x16x8xf32>
    "tpu.trace_start"() <{level = 10 : i32, message = "bqd,bkd->bqk"}> : () -> ()
    %cst_35 = arith.constant dense<0.000000e+00> : vector<1x8x16xf32>
    %74 = tpu.matmul %71, %72, %cst_35 {dimension_numbers = #tpu.dot_dimension_numbers<[2], [2], [1], [1], [0, 0, 0, 1, 1, 1], [0], [0]>} : vector<1x8x8xf32>, vector<1x16x8xf32>, vector<1x8x16xf32> -> vector<1x8x16xf32>
    "tpu.trace_stop"() : () -> ()
    %cst_36 = arith.constant dense<0xFF800000> : vector<1x8xf32>
    %75 = vector.multi_reduction <maximumf>, %74, %cst_36 [2] : vector<1x8x16xf32> to vector<1x8xf32>
    %76 = vector.shape_cast %75 : vector<1x8xf32> to vector<1x8x1xf32>
    %77 = vector.broadcast %76 : vector<1x8x1xf32> to vector<1x8x16xf32>
    %78 = arith.subf %74, %77 : vector<1x8x16xf32>
    %79 = math.exp %78 : vector<1x8x16xf32>
    %cst_37 = arith.constant dense<0.000000e+00> : vector<1x8xf32>
    %80 = vector.multi_reduction <add>, %79, %cst_37 [2] : vector<1x8x16xf32> to vector<1x8xf32>
    %81 = vector.shape_cast %80 : vector<1x8xf32> to vector<1x8x1xf32>
    %82 = tpu.reciprocal %81 {approx = true} : vector<1x8x1xf32> -> vector<1x8x1xf32>
    %83 = vector.broadcast %82 : vector<1x8x1xf32> to vector<1x8x16xf32>
    %84 = arith.mulf %79, %83 : vector<1x8x16xf32>
    "tpu.trace_start"() <{level = 10 : i32, message = "bqk,bkd->bqd"}> : () -> ()
    %cst_38 = arith.constant dense<0.000000e+00> : vector<1x8x8xf32>
    %85 = tpu.matmul %84, %73, %cst_38 {dimension_numbers = #tpu.dot_dimension_numbers<[2], [1], [1], [2], [0, 0, 0, 1, 1, 2], [0], [0]>} : vector<1x8x16xf32>, vector<1x16x8xf32>, vector<1x8x8xf32> -> vector<1x8x8xf32>
    "tpu.trace_stop"() : () -> ()
    %86 = tpu.concatenate %40, %55, %70, %85 in 2 : vector<1x8x8xf32>, vector<1x8x8xf32>, vector<1x8x8xf32>, vector<1x8x8xf32> -> vector<1x8x32xf32>
    %87 = vector.shape_cast %86 : vector<1x8x32xf32> to vector<8x32xf32>
    %88 = arith.addf %10, %87 : vector<8x32xf32>
    %c0_39 = arith.constant 0 : index
    %c0_40 = arith.constant 0 : index
    %89 = vector.load %arg10[%c0_39, %c0_40] : memref<32x32xf32, #tpu.memory_space<vmem>>, vector<32x32xf32>
    %cst_41 = arith.constant dense<0.000000e+00> : vector<8x32xf32>
    %90 = tpu.matmul %88, %89, %cst_41 {dimension_numbers = #tpu.dot_dimension_numbers<[1], [0], [0], [1], [0, 0, 1, 1], [], []>} : vector<8x32xf32>, vector<32x32xf32>, vector<8x32xf32> -> vector<8x32xf32>
    %c0_42 = arith.constant 0 : index
    %c0_43 = arith.constant 0 : index
    %91 = vector.load %arg11[%c0_42, %c0_43] : memref<1x32xf32, #tpu.memory_space<vmem>>, vector<1x32xf32>
    %92 = vector.broadcast %91 : vector<1x32xf32> to vector<8x32xf32>
    %93 = arith.addf %90, %92 : vector<8x32xf32>
    %cst_44 = arith.constant 0.000000e+00 : f32
    %94 = vector.broadcast %cst_44 : f32 to vector<8x32xf32>
    %95 = arith.maximumf %93, %94 : vector<8x32xf32>
    %96 = arith.addf %88, %95 : vector<8x32xf32>
    %97 = vector.shape_cast %96 : vector<8x32xf32> to vector<1x8x32xf32>
    %c0_45 = arith.constant 0 : index
    %c0_46 = arith.constant 0 : index
    %c0_47 = arith.constant 0 : index
    %98 = vector.load %arg12[%c0_45, %c0_46, %c0_47] : memref<1x8x32xf32, #tpu.memory_space<vmem>>, vector<1x8x32xf32>
    tpu.vector_store %arg12[%c0_45, %c0_46, %c0_47], %97 {strides = array<i32>} : memref<1x8x32xf32, #tpu.memory_space<vmem>>, vector<1x8x32xf32>,
    return
  }
  func.func @transform_0(%arg0: i32) -> (i32, i32, i32) {
    %c0_i32 = arith.constant 0 : i32
    %c0_i32_0 = arith.constant 0 : i32
    %c0_i32_1 = arith.constant 0 : i32
    return %arg0, %c0_i32, %c0_i32_0 : i32, i32, i32
  }
  func.func @transform_1(%arg0: i32) -> (i32, i32, i32) {
    %c0_i32 = arith.constant 0 : i32
    %c0_i32_0 = arith.constant 0 : i32
    %c0_i32_1 = arith.constant 0 : i32
    return %arg0, %c0_i32, %c0_i32_0 : i32, i32, i32
  }
  func.func @transform_2(%arg0: i32) -> (i32, i32, i32) {
    %c0_i32 = arith.constant 0 : i32
    %c0_i32_0 = arith.constant 0 : i32
    %c0_i32_1 = arith.constant 0 : i32
    return %arg0, %c0_i32, %c0_i32_0 : i32, i32, i32
  }
  func.func @transform_3(%arg0: i32) -> (i32, i32) {
    %c0_i32 = arith.constant 0 : i32
    %c0_i32_0 = arith.constant 0 : i32
    %c0_i32_1 = arith.constant 0 : i32
    return %c0_i32, %c0_i32_0 : i32, i32
  }
  func.func @transform_4(%arg0: i32) -> (i32, i32) {
    %c0_i32 = arith.constant 0 : i32
    %c0_i32_0 = arith.constant 0 : i32
    %c0_i32_1 = arith.constant 0 : i32
    return %c0_i32, %c0_i32_0 : i32, i32
  }
  func.func @transform_5(%arg0: i32) -> (i32, i32) {
    %c0_i32 = arith.constant 0 : i32
    %c0_i32_0 = arith.constant 0 : i32
    %c0_i32_1 = arith.constant 0 : i32
    return %c0_i32, %c0_i32_0 : i32, i32
  }
  func.func @transform_6(%arg0: i32) -> (i32, i32) {
    %c0_i32 = arith.constant 0 : i32
    %c0_i32_0 = arith.constant 0 : i32
    %c0_i32_1 = arith.constant 0 : i32
    return %c0_i32, %c0_i32_0 : i32, i32
  }
  func.func @transform_7(%arg0: i32) -> (i32, i32) {
    %c0_i32 = arith.constant 0 : i32
    %c0_i32_0 = arith.constant 0 : i32
    %c0_i32_1 = arith.constant 0 : i32
    return %c0_i32, %c0_i32_0 : i32, i32
  }
  func.func @transform_8(%arg0: i32) -> (i32, i32) {
    %c0_i32 = arith.constant 0 : i32
    %c0_i32_0 = arith.constant 0 : i32
    %c0_i32_1 = arith.constant 0 : i32
    return %c0_i32, %c0_i32_0 : i32, i32
  }
  func.func @transform_9(%arg0: i32) -> (i32, i32) {
    %c0_i32 = arith.constant 0 : i32
    %c0_i32_0 = arith.constant 0 : i32
    %c0_i32_1 = arith.constant 0 : i32
    return %c0_i32, %c0_i32_0 : i32, i32
  }
  func.func @transform_10(%arg0: i32) -> (i32, i32) {
    %c0_i32 = arith.constant 0 : i32
    %c0_i32_0 = arith.constant 0 : i32
    %c0_i32_1 = arith.constant 0 : i32
    return %c0_i32, %c0_i32_0 : i32, i32
  }
  func.func @transform_11(%arg0: i32) -> (i32, i32, i32) {
    %c0_i32 = arith.constant 0 : i32
    %c0_i32_0 = arith.constant 0 : i32
    %c0_i32_1 = arith.constant 0 : i32
    return %arg0, %c0_i32, %c0_i32_0 : i32, i32, i32
  }
}

</mosaic_0001>

<llo_original>
// kernel: tpu_custom_call.1
$region0: #{tpu_custom_call.1}
  #allocation0 [shape = 'u32[]', space=smem, size = 0x4, offset = 0x4, fixed_abs, tag = 'smem constant byte address 0x4 - core index']
  #allocation1 [shape = 'u32[144,128]{1,0:T(1,128)}', space=vmem, size = 0x12000, scoped, tag = 'internal scratch']
  %s0 = inlined_call_operand.hbm [shape: f32[2,8,32], index: 0, kind: input, shape index: {}]
  %s1 = inlined_call_operand.hbm [shape: f32[2,16,32], index: 1, kind: input, shape index: {}]
  %s2 = inlined_call_operand.hbm [shape: f32[2,16,32], index: 2, kind: input, shape index: {}]
  %s3 = inlined_call_operand.hbm [shape: f32[32,32], index: 3, kind: input, shape index: {}]
  %s4 = inlined_call_operand.hbm [shape: f32[1,32], index: 4, kind: input, shape index: {}]
  %s5 = inlined_call_operand.hbm [shape: f32[32,32], index: 5, kind: input, shape index: {}]
  %s6 = inlined_call_operand.hbm [shape: f32[1,32], index: 6, kind: input, shape index: {}]
  %s7 = inlined_call_operand.hbm [shape: f32[32,32], index: 7, kind: input, shape index: {}]
  %s8 = inlined_call_operand.hbm [shape: f32[1,32], index: 8, kind: input, shape index: {}]
  %s9 = inlined_call_operand.hbm [shape: f32[32,32], index: 9, kind: input, shape index: {}]
  %s10 = inlined_call_operand.hbm [shape: f32[1,32], index: 10, kind: input, shape index: {}]
  %s11 = inlined_call_operand.hbm [shape: f32[2,8,32], index: 11, kind: output, shape index: {}]
  %s12 = sld [smem:[#allocation0]]
  $region121: #{tpu_custom_call.1} parent=0
    _
  %s14 = ssub.s32 1, %s12
  %s15 = scalar_select 0, %s14, %s12
  $region1: #{tpu_custom_call.1} parent=0
    #allocation2 [shape = 'u8[8192]{0}', space=vmem, size = 0x2000, scoped, tag = 'input window, operand 0']
    #allocation3 [shape = 's32[2]{0}', space=sflag, size = 0x8, scoped, tag = 'scoped memory for tpu_custom_call.1']
    #allocation4 [shape = 's32[2]{0}', space=sflag, size = 0x8, scoped, tag = 'scoped memory for tpu_custom_call.1']
    #allocation5 [shape = 'u8[16384]{0}', space=vmem, size = 0x4000, scoped, tag = 'input window, operand 1']
    #allocation6 [shape = 's32[2]{0}', space=sflag, size = 0x8, scoped, tag = 'scoped memory for tpu_custom_call.1']
    #allocation7 [shape = 'u8[16384]{0}', space=vmem, size = 0x4000, scoped, tag = 'input window, operand 2']
    #allocation8 [shape = 'u8[16384]{0}', space=vmem, size = 0x4000, scoped, tag = 'input window, operand 3, single buffered']
    #allocation9 [shape = 's32[1]{0}', space=sflag, size = 0x4, scoped, tag = 'scoped memory for tpu_custom_call.1']
    #allocation10 [shape = 'u8[512]{0}', space=vmem, size = 0x400, scoped, tag = 'input window, operand 4, single buffered']
    #allocation11 [shape = 'u8[16384]{0}', space=vmem, size = 0x4000, scoped, tag = 'input window, operand 5, single buffered']
    #allocation12 [shape = 's32[1]{0}', space=sflag, size = 0x4, scoped, tag = 'scoped memory for tpu_custom_call.1']
    #allocation13 [shape = 'u8[512]{0}', space=vmem, size = 0x400, scoped, tag = 'input window, operand 6, single buffered']
    #allocation14 [shape = 'u8[16384]{0}', space=vmem, size = 0x4000, scoped, tag = 'input window, operand 7, single buffered']
    #allocation15 [shape = 's32[1]{0}', space=sflag, size = 0x4, scoped, tag = 'scoped memory for tpu_custom_call.1']
    #allocation16 [shape = 'u8[512]{0}', space=vmem, size = 0x400, scoped, tag = 'input window, operand 8, single buffered']
    #allocation17 [shape = 'u8[16384]{0}', space=vmem, size = 0x4000, scoped, tag = 'input window, operand 9, single buffered']
    #allocation18 [shape = 's32[1]{0}', space=sflag, size = 0x4, scoped, tag = 'scoped memory for tpu_custom_call.1']
    #allocation19 [shape = 'u8[512]{0}', space=vmem, size = 0x400, scoped, tag = 'input window, operand 10, single buffered']
    #allocation20 [shape = 'u8[8192]{0}', space=vmem, size = 0x2000, scoped, tag = 'output window, operand 0']
    %16 = vsyncpa [#allocation3], 0
    %s17 = scalar_lea.sflag [#allocation3], 1
    %18 = vsyncpa %s17, 0
    %19 = vsyncpa [#allocation6], 0
    %s20 = scalar_lea.sflag [#allocation6], 1
    %21 = vsyncpa %s20, 0
    %22 = vsyncpa [#allocation9], 0
    %23 = vsyncpa [#allocation12], 0
    %24 = vsyncpa [#allocation15], 0
    %25 = vsyncpa [#allocation18], 0
    %26 = vsyncpa [#allocation4], 0
    %s27 = scalar_lea.sflag [#allocation4], 1
    %28 = vsyncpa %s27, 0
    loop: start=0, step=1, limit=4
    $region2: #{tpu_custom_call.1} parent=1 // loop_pre_header
      _
    $region3: #{tpu_custom_call.1} parent=1 // loop_header
      %s30 = sphi 0, %s34
      %p31 = scmp.ge.s32.totalorder %s30, 4
      %s40 = sphi 0, %s42
      %s43 = sphi 0, %s40
      %s44 = sphi 0, %s43
      %s60 = sphi 0, %s44
      %s66 = sphi 0, %s68
      %s69 = sphi 0, %s66
      %s70 = sphi 0, %s69
      %s86 = sphi 0, %s70
      %s92 = sphi 0, %s94
      %s95 = sphi 0, %s92
      %s96 = sphi 0, %s95
      %s112 = sphi 0, %s96
      %s116 = sphi 0, %s116
      %s118 = sphi 0, %s116
      %s119 = sphi 0, %s118
      %s133 = sphi 0, %s119
      %s137 = sphi 0, %s137
      %s139 = sphi 0, %s137
      %s140 = sphi 0, %s139
      %s154 = sphi 0, %s140
      %s158 = sphi 0, %s158
      %s160 = sphi 0, %s158
      %s161 = sphi 0, %s160
      %s175 = sphi 0, %s161
      %s179 = sphi 0, %s179
      %s181 = sphi 0, %s179
      %s182 = sphi 0, %s181
      %s196 = sphi 0, %s182
      %s200 = sphi 0, %s200
      %s202 = sphi 0, %s200
      %s203 = sphi 0, %s202
      %s217 = sphi 0, %s203
      %s221 = sphi 0, %s221
      %s223 = sphi 0, %s221
      %s224 = sphi 0, %s223
      %s238 = sphi 0, %s224
      %s242 = sphi 0, %s242
      %s244 = sphi 0, %s242
      %s245 = sphi 0, %s244
      %s259 = sphi 0, %s245
      %s263 = sphi 0, %s263
      %s265 = sphi 0, %s263
      %s266 = sphi 0, %s265
      %s280 = sphi 0, %s266
      %s286 = sphi 0, %s288
      %s289 = sphi 0, %s286
      %s290 = sphi 0, %s289
      %s306 = sphi 0, %s290
    $region4: #{tpu_custom_call.1} parent=1 // loop_header_branch
      %33 = sbr.rel (%p31) target = $region8
    $region5: #{tpu_custom_call.1} parent=1 // loop_body
      %s35 = ssub.s32 %s30, 1
      %s36 = ssub.s32 %s30, 2
      %s37 = sadd.s32 %s30, 1
      %s38 = ssub.s32 %s30, %s37
      %p39 = scmp.eq.s32.totalorder %s38, 0
      %s41 = sadd.s32 %s40, 1
      %s42 = scalar_select %p39, %s40, %s41
      %p45 = pneg %p39
      %p46 = scmp.eq.s32.totalorder %s30, 1
      %p47 = por %p45, %p46
      %p48 = scmp.ne.s32.totalorder %s40, %s43
      %p49 = scmp.eq.s32.totalorder %s30, 0
      %p50 = por %p48, %p49
      %p51 = scmp.ne.s32.totalorder %s40, %s43
      %p52 = scmp.eq.s32.totalorder %s35, 1
      %p53 = por %p51, %p52
      %p54 = scmp.ne.s32.totalorder %s43, %s44
      %p55 = scmp.eq.s32.totalorder %s35, 0
      %p56 = por %p54, %p55
      %p57 = scmp.ne.s32.totalorder %s43, %s44
      %p58 = scmp.eq.s32.totalorder %s36, 1
      %p59 = por %p57, %p58
      %p61 = scmp.ne.s32.totalorder %s44, %s60
      %p62 = scmp.eq.s32.totalorder %s36, 0
      %p63 = por %p61, %p62
      %s64 = ssub.s32 %s30, %s37
      %p65 = scmp.eq.s32.totalorder %s64, 0
      %s67 = sadd.s32 %s66, 1
      %s68 = scalar_select %p65, %s66, %s67
      %p71 = pneg %p65
      %p72 = scmp.eq.s32.totalorder %s30, 1
      %p73 = por %p71, %p72
      %p74 = scmp.ne.s32.totalorder %s66, %s69
      %p75 = scmp.eq.s32.totalorder %s30, 0
      %p76 = por %p74, %p75
      %p77 = scmp.ne.s32.totalorder %s66, %s69
      %p78 = scmp.eq.s32.totalorder %s35, 1
      %p79 = por %p77, %p78
      %p80 = scmp.ne.s32.totalorder %s69, %s70
      %p81 = scmp.eq.s32.totalorder %s35, 0
      %p82 = por %p80, %p81
      %p83 = scmp.ne.s32.totalorder %s69, %s70
      %p84 = scmp.eq.s32.totalorder %s36, 1
      %p85 = por %p83, %p84
      %p87 = scmp.ne.s32.totalorder %s70, %s86
      %p88 = scmp.eq.s32.totalorder %s36, 0
      %p89 = por %p87, %p88
      %s90 = ssub.s32 %s30, %s37
      %p91 = scmp.eq.s32.totalorder %s90, 0
      %s93 = sadd.s32 %s92, 1
      %s94 = scalar_select %p91, %s92, %s93
      %p97 = pneg %p91
      %p98 = scmp.eq.s32.totalorder %s30, 1
      %p99 = por %p97, %p98
      %p100 = scmp.ne.s32.totalorder %s92, %s95
      %p101 = scmp.eq.s32.totalorder %s30, 0
      %p102 = por %p100, %p101
      %p103 = scmp.ne.s32.totalorder %s92, %s95
      %p104 = scmp.eq.s32.totalorder %s35, 1
      %p105 = por %p103, %p104
      %p106 = scmp.ne.s32.totalorder %s95, %s96
      %p107 = scmp.eq.s32.totalorder %s35, 0
      %p108 = por %p106, %p107
      %p109 = scmp.ne.s32.totalorder %s95, %s96
      %p110 = scmp.eq.s32.totalorder %s36, 1
      %p111 = por %p109, %p110
      %p113 = scmp.ne.s32.totalorder %s96, %s112
      %p114 = scmp.eq.s32.totalorder %s36, 0
      %p115 = por %p113, %p114
      %s117 = sadd.s32 %s116, 1
      %p120 = scmp.eq.s32.totalorder %s30, 1
      %p121 = scmp.ne.s32.totalorder %s116, %s118
      %p122 = scmp.eq.s32.totalorder %s30, 0
      %p123 = por %p121, %p122
      %p124 = scmp.ne.s32.totalorder %s116, %s118
      %p125 = scmp.eq.s32.totalorder %s35, 1
      %p126 = por %p124, %p125
      %p127 = scmp.ne.s32.totalorder %s118, %s119
      %p128 = scmp.eq.s32.totalorder %s35, 0
      %p129 = por %p127, %p128
      %p130 = scmp.ne.s32.totalorder %s118, %s119
      %p131 = scmp.eq.s32.totalorder %s36, 1
      %p132 = por %p130, %p131
      %p134 = scmp.ne.s32.totalorder %s119, %s133
      %p135 = scmp.eq.s32.totalorder %s36, 0
      %p136 = por %p134, %p135
      %s138 = sadd.s32 %s137, 1
      %p141 = scmp.eq.s32.totalorder %s30, 1
      %p142 = scmp.ne.s32.totalorder %s137, %s139
      %p143 = scmp.eq.s32.totalorder %s30, 0
      %p144 = por %p142, %p143
      %p145 = scmp.ne.s32.totalorder %s137, %s139
      %p146 = scmp.eq.s32.totalorder %s35, 1
      %p147 = por %p145, %p146
      %p148 = scmp.ne.s32.totalorder %s139, %s140
      %p149 = scmp.eq.s32.totalorder %s35, 0
      %p150 = por %p148, %p149
      %p151 = scmp.ne.s32.totalorder %s139, %s140
      %p152 = scmp.eq.s32.totalorder %s36, 1
      %p153 = por %p151, %p152
      %p155 = scmp.ne.s32.totalorder %s140, %s154
      %p156 = scmp.eq.s32.totalorder %s36, 0
      %p157 = por %p155, %p156
      %s159 = sadd.s32 %s158, 1
      %p162 = scmp.eq.s32.totalorder %s30, 1
      %p163 = scmp.ne.s32.totalorder %s158, %s160
      %p164 = scmp.eq.s32.totalorder %s30, 0
      %p165 = por %p163, %p164
      %p166 = scmp.ne.s32.totalorder %s158, %s160
      %p167 = scmp.eq.s32.totalorder %s35, 1
      %p168 = por %p166, %p167
      %p169 = scmp.ne.s32.totalorder %s160, %s161
      %p170 = scmp.eq.s32.totalorder %s35, 0
      %p171 = por %p169, %p170
      %p172 = scmp.ne.s32.totalorder %s160, %s161
      %p173 = scmp.eq.s32.totalorder %s36, 1
      %p174 = por %p172, %p173
      %p176 = scmp.ne.s32.totalorder %s161, %s175
      %p177 = scmp.eq.s32.totalorder %s36, 0
      %p178 = por %p176, %p177
      %s180 = sadd.s32 %s179, 1
      %p183 = scmp.eq.s32.totalorder %s30, 1
      %p184 = scmp.ne.s32.totalorder %s179, %s181
      %p185 = scmp.eq.s32.totalorder %s30, 0
      %p186 = por %p184, %p185
      %p187 = scmp.ne.s32.totalorder %s179, %s181
      %p188 = scmp.eq.s32.totalorder %s35, 1
      %p189 = por %p187, %p188
      %p190 = scmp.ne.s32.totalorder %s181, %s182
      %p191 = scmp.eq.s32.totalorder %s35, 0
      %p192 = por %p190, %p191
      %p193 = scmp.ne.s32.totalorder %s181, %s182
      %p194 = scmp.eq.s32.totalorder %s36, 1
      %p195 = por %p193, %p194
      %p197 = scmp.ne.s32.totalorder %s182, %s196
      %p198 = scmp.eq.s32.totalorder %s36, 0
      %p199 = por %p197, %p198
      %s201 = sadd.s32 %s200, 1
      %p204 = scmp.eq.s32.totalorder %s30, 1
      %p205 = scmp.ne.s32.totalorder %s200, %s202
      %p206 = scmp.eq.s32.totalorder %s30, 0
      %p207 = por %p205, %p206
      %p208 = scmp.ne.s32.totalorder %s200, %s202
      %p209 = scmp.eq.s32.totalorder %s35, 1
      %p210 = por %p208, %p209
      %p211 = scmp.ne.s32.totalorder %s202, %s203
      %p212 = scmp.eq.s32.totalorder %s35, 0
      %p213 = por %p211, %p212
      %p214 = scmp.ne.s32.totalorder %s202, %s203
      %p215 = scmp.eq.s32.totalorder %s36, 1
      %p216 = por %p214, %p215
      %p218 = scmp.ne.s32.totalorder %s203, %s217
      %p219 = scmp.eq.s32.totalorder %s36, 0
      %p220 = por %p218, %p219
      %s222 = sadd.s32 %s221, 1
      %p225 = scmp.eq.s32.totalorder %s30, 1
      %p226 = scmp.ne.s32.totalorder %s221, %s223
      %p227 = scmp.eq.s32.totalorder %s30, 0
      %p228 = por %p226, %p227
      %p229 = scmp.ne.s32.totalorder %s221, %s223
      %p230 = scmp.eq.s32.totalorder %s35, 1
      %p231 = por %p229, %p230
      %p232 = scmp.ne.s32.totalorder %s223, %s224
      %p233 = scmp.eq.s32.totalorder %s35, 0
      %p234 = por %p232, %p233
      %p235 = scmp.ne.s32.totalorder %s223, %s224
      %p236 = scmp.eq.s32.totalorder %s36, 1
      %p237 = por %p235, %p236
      %p239 = scmp.ne.s32.totalorder %s224, %s238
      %p240 = scmp.eq.s32.totalorder %s36, 0
      %p241 = por %p239, %p240
      %s243 = sadd.s32 %s242, 1
      %p246 = scmp.eq.s32.totalorder %s30, 1
      %p247 = scmp.ne.s32.totalorder %s242, %s244
      %p248 = scmp.eq.s32.totalorder %s30, 0
      %p249 = por %p247, %p248
      %p250 = scmp.ne.s32.totalorder %s242, %s244
      %p251 = scmp.eq.s32.totalorder %s35, 1
      %p252 = por %p250, %p251
      %p253 = scmp.ne.s32.totalorder %s244, %s245
      %p254 = scmp.eq.s32.totalorder %s35, 0
      %p255 = por %p253, %p254
      %p256 = scmp.ne.s32.totalorder %s244, %s245
      %p257 = scmp.eq.s32.totalorder %s36, 1
      %p258 = por %p256, %p257
      %p260 = scmp.ne.s32.totalorder %s245, %s259
      %p261 = scmp.eq.s32.totalorder %s36, 0
      %p262 = por %p260, %p261
      %s264 = sadd.s32 %s263, 1
      %p267 = scmp.eq.s32.totalorder %s30, 1
      %p268 = scmp.ne.s32.totalorder %s263, %s265
      %p269 = scmp.eq.s32.totalorder %s30, 0
      %p270 = por %p268, %p269
      %p271 = scmp.ne.s32.totalorder %s263, %s265
      %p272 = scmp.eq.s32.totalorder %s35, 1
      %p273 = por %p271, %p272
      %p274 = scmp.ne.s32.totalorder %s265, %s266
      %p275 = scmp.eq.s32.totalorder %s35, 0
      %p276 = por %p274, %p275
      %p277 = scmp.ne.s32.totalorder %s265, %s266
      %p278 = scmp.eq.s32.totalorder %s36, 1
      %p279 = por %p277, %p278
      %p281 = scmp.ne.s32.totalorder %s266, %s280
      %p282 = scmp.eq.s32.totalorder %s36, 0
      %p283 = por %p281, %p282
      %s284 = ssub.s32 %s30, %s37
      %p285 = scmp.eq.s32.totalorder %s284, 0
      %s287 = sadd.s32 %s286, 1
      %s288 = scalar_select %p285, %s286, %s287
      %p291 = pneg %p285
      %p292 = scmp.eq.s32.totalorder %s30, 1
      %p293 = por %p291, %p292
      %p294 = scmp.ne.s32.totalorder %s286, %s289
      %p295 = scmp.eq.s32.totalorder %s30, 0
      %p296 = por %p294, %p295
      %p297 = scmp.ne.s32.totalorder %s286, %s289
      %p298 = scmp.eq.s32.totalorder %s35, 1
      %p299 = por %p297, %p298
      %p300 = scmp.ne.s32.totalorder %s289, %s290
      %p301 = scmp.eq.s32.totalorder %s35, 0
      %p302 = por %p300, %p301
      %p303 = scmp.ne.s32.totalorder %s289, %s290
      %p304 = scmp.eq.s32.totalorder %s36, 1
      %p305 = por %p303, %p304
      %p307 = scmp.ne.s32.totalorder %s290, %s306
      %p308 = scmp.eq.s32.totalorder %s36, 0
      %p309 = por %p307, %p308
      %p310 = scmp.le.s32.totalorder 1, %s30
      %p311 = scmp.lt.s32.totalorder %s30, 3
      %p312 = pnand %p310, %p311
      %p313 = pneg %p312
      // Predicated region
      $region9: #{tpu_custom_call.1} parent=5 // pred_check
        _
      $region10: #{tpu_custom_call.1} parent=5 // pred_check_branch
        %315 = sbr.rel (%p312) target = $region12
      $region11: #{tpu_custom_call.1} parent=5 // pred_region
        %s316 = ssub.s32 %s30, 1
        // Predicated region
        $region13: #{tpu_custom_call.1} parent=11 // pred_check
          %p317 = pneg %p129
        $region14: #{tpu_custom_call.1} parent=11 // pred_check_branch
          %319 = sbr.rel (%p317) target = $region16
        $region15: #{tpu_custom_call.1} parent=11 // pred_region
          %s321 = ssub.s32 512, 512
          %322 = vsyncadd [#allocation9], %s321
          %s323 = sshll.u32 [#allocation8], 4
          %s324 = int_to_ptr.vmem [resolvable:$true] %s323
          %329 = dma.hbm_to_vmem [thread:$0]  %s3, 512, %s324, [#allocation9], 128, 128, 8
        $region16: #{tpu_custom_call.1} parent=11 // pred_fallthru
          _
        // Predicated region
        $region17: #{tpu_custom_call.1} parent=11 // pred_check
          %p330 = pneg %p150
        $region18: #{tpu_custom_call.1} parent=11 // pred_check_branch
          %332 = sbr.rel (%p330) target = $region20
        $region19: #{tpu_custom_call.1} parent=11 // pred_region
          %s334 = ssub.s32 16, 16
          %335 = vsyncadd [#allocation9], %s334
          %s337 = sshll.u32 [#allocation10], 4
          %s338 = int_to_ptr.vmem [resolvable:$true] %s337
          %340 = dma.hbm_to_vmem [thread:$0]  %s4, 16, %s338, [#allocation9]
        $region20: #{tpu_custom_call.1} parent=11 // pred_fallthru
          _
        // Predicated region
        $region21: #{tpu_custom_call.1} parent=11 // pred_check
          %p341 = pneg %p171
        $region22: #{tpu_custom_call.1} parent=11 // pred_check_branch
          %343 = sbr.rel (%p341) target = $region24
        $region23: #{tpu_custom_call.1} parent=11 // pred_region
          %s345 = ssub.s32 512, 512
          %346 = vsyncadd [#allocation12], %s345
          %s347 = sshll.u32 [#allocation11], 4
          %s348 = int_to_ptr.vmem [resolvable:$true] %s347
          %353 = dma.hbm_to_vmem [thread:$0]  %s5, 512, %s348, [#allocation12], 128, 128, 8
        $region24: #{tpu_custom_call.1} parent=11 // pred_fallthru
          _
        // Predicated region
        $region25: #{tpu_custom_call.1} parent=11 // pred_check
          %p354 = pneg %p192
        $region26: #{tpu_custom_call.1} parent=11 // pred_check_branch
          %356 = sbr.rel (%p354) target = $region28
        $region27: #{tpu_custom_call.1} parent=11 // pred_region
          %s358 = ssub.s32 16, 16
          %359 = vsyncadd [#allocation12], %s358
          %s361 = sshll.u32 [#allocation13], 4
          %s362 = int_to_ptr.vmem [resolvable:$true] %s361
          %364 = dma.hbm_to_vmem [thread:$0]  %s6, 16, %s362, [#allocation12]
        $region28: #{tpu_custom_call.1} parent=11 // pred_fallthru
          _
        // Predicated region
        $region29: #{tpu_custom_call.1} parent=11 // pred_check
          %p365 = pneg %p213
        $region30: #{tpu_custom_call.1} parent=11 // pred_check_branch
          %367 = sbr.rel (%p365) target = $region32
        $region31: #{tpu_custom_call.1} parent=11 // pred_region
          %s369 = ssub.s32 512, 512
          %370 = vsyncadd [#allocation15], %s369
          %s371 = sshll.u32 [#allocation14], 4
          %s372 = int_to_ptr.vmem [resolvable:$true] %s371
          %377 = dma.hbm_to_vmem [thread:$0]  %s7, 512, %s372, [#allocation15], 128, 128, 8
        $region32: #{tpu_custom_call.1} parent=11 // pred_fallthru
          _
        // Predicated region
        $region33: #{tpu_custom_call.1} parent=11 // pred_check
          %p378 = pneg %p234
        $region34: #{tpu_custom_call.1} parent=11 // pred_check_branch
          %380 = sbr.rel (%p378) target = $region36
        $region35: #{tpu_custom_call.1} parent=11 // pred_region
          %s382 = ssub.s32 16, 16
          %383 = vsyncadd [#allocation15], %s382
          %s385 = sshll.u32 [#allocation16], 4
          %s386 = int_to_ptr.vmem [resolvable:$true] %s385
          %388 = dma.hbm_to_vmem [thread:$0]  %s8, 16, %s386, [#allocation15]
        $region36: #{tpu_custom_call.1} parent=11 // pred_fallthru
          _
        // Predicated region
        $region37: #{tpu_custom_call.1} parent=11 // pred_check
          %p389 = pneg %p255
        $region38: #{tpu_custom_call.1} parent=11 // pred_check_branch
          %391 = sbr.rel (%p389) target = $region40
        $region39: #{tpu_custom_call.1} parent=11 // pred_region
          %s393 = ssub.s32 512, 512
          %394 = vsyncadd [#allocation18], %s393
          %s395 = sshll.u32 [#allocation17], 4
          %s396 = int_to_ptr.vmem [resolvable:$true] %s395
          %401 = dma.hbm_to_vmem [thread:$0]  %s9, 512, %s396, [#allocation18], 128, 128, 8
        $region40: #{tpu_custom_call.1} parent=11 // pred_fallthru
          _
        // Predicated region
        $region41: #{tpu_custom_call.1} parent=11 // pred_check
          %p402 = pneg %p276
        $region42: #{tpu_custom_call.1} parent=11 // pred_check_branch
          %404 = sbr.rel (%p402) target = $region44
        $region43: #{tpu_custom_call.1} parent=11 // pred_region
          %s406 = ssub.s32 16, 16
          %407 = vsyncadd [#allocation18], %s406
          %s409 = sshll.u32 [#allocation19], 4
          %s410 = int_to_ptr.vmem [resolvable:$true] %s409
          %412 = dma.hbm_to_vmem [thread:$0]  %s10, 16, %s410, [#allocation18]
        $region44: #{tpu_custom_call.1} parent=11 // pred_fallthru
          _
      $region12: #{tpu_custom_call.1} parent=5 // pred_fallthru
        _
      %p413 = scmp.lt.s32.totalorder %s30, 2
      // Predicated region
      $region45: #{tpu_custom_call.1} parent=5 // pred_check
        %p414 = pneg %p413
      $region46: #{tpu_custom_call.1} parent=5 // pred_check_branch
        %416 = sbr.rel (%p414) target = $region48
      $region47: #{tpu_custom_call.1} parent=5 // pred_region
        // Predicated region
        $region49: #{tpu_custom_call.1} parent=47 // pred_check
          %p417 = pneg %p50
        $region50: #{tpu_custom_call.1} parent=47 // pred_check_branch
          %419 = sbr.rel (%p417) target = $region52
        $region51: #{tpu_custom_call.1} parent=47 // pred_region
          %s420 = sand.u32 %s40, 1
          %s421 = scalar_lea.sflag [#allocation3], %s420
          %s422 = sand.u32 %s40, 1
          %s423 = smul.addr %s422, 8
          %s424 = scalar_lea.vmem [#allocation2], %s423
          %s426 = ssub.s32 128, 128
          %427 = vsyncadd %s421, %s426
          %s428 = smul.addr %s30, 128
          %s429 = scalar_lea.hbm %s0, %s428
          %s431 = sshll.u32 %s424, 4
          %s432 = int_to_ptr.vmem [resolvable:$true] %s431
          %434 = dma.hbm_to_vmem [thread:$0]  %s429, 128, %s432, %s421
        $region52: #{tpu_custom_call.1} parent=47 // pred_fallthru
          _
        // Predicated region
        $region53: #{tpu_custom_call.1} parent=47 // pred_check
          %p435 = pneg %p76
        $region54: #{tpu_custom_call.1} parent=47 // pred_check_branch
          %437 = sbr.rel (%p435) target = $region56
        $region55: #{tpu_custom_call.1} parent=47 // pred_region
          %s438 = sand.u32 %s30, 1
          %s439 = scalar_lea.sflag [#allocation6], %s438
          %s440 = sand.u32 %s66, 1
          %s441 = smul.addr %s440, 16
          %s442 = scalar_lea.vmem [#allocation5], %s441
          %s444 = ssub.s32 256, 256
          %445 = vsyncadd %s439, %s444
          %s446 = smul.addr %s30, 2
          %s447 = smul.addr %s446, 128
          %s448 = scalar_lea.hbm %s1, %s447
          %s449 = sshll.u32 %s442, 4
          %s450 = int_to_ptr.vmem [resolvable:$true] %s449
          %455 = dma.hbm_to_vmem [thread:$0]  %s448, 256, %s450, %s439, 128, 128, 8
        $region56: #{tpu_custom_call.1} parent=47 // pred_fallthru
          _
        // Predicated region
        $region57: #{tpu_custom_call.1} parent=47 // pred_check
          %p456 = pneg %p102
        $region58: #{tpu_custom_call.1} parent=47 // pred_check_branch
          %458 = sbr.rel (%p456) target = $region60
        $region59: #{tpu_custom_call.1} parent=47 // pred_region
          %s459 = sand.u32 %s30, 1
          %s460 = scalar_lea.sflag [#allocation6], %s459
          %s461 = sand.u32 %s92, 1
          %s462 = smul.addr %s461, 16
          %s463 = scalar_lea.vmem [#allocation7], %s462
          %s465 = ssub.s32 256, 256
          %466 = vsyncadd %s460, %s465
          %s467 = smul.addr %s30, 2
          %s468 = smul.addr %s467, 128
          %s469 = scalar_lea.hbm %s2, %s468
          %s470 = sshll.u32 %s463, 4
          %s471 = int_to_ptr.vmem [resolvable:$true] %s470
          %476 = dma.hbm_to_vmem [thread:$0]  %s469, 256, %s471, %s460, 128, 128, 8
        $region60: #{tpu_custom_call.1} parent=47 // pred_fallthru
          _
      $region48: #{tpu_custom_call.1} parent=5 // pred_fallthru
        _
      %p477 = scmp.le.s32.totalorder 1, %s30
      %p478 = scmp.lt.s32.totalorder %s30, 3
      %p479 = pnand %p477, %p478
      %p480 = pneg %p479
      // Predicated region
      $region61: #{tpu_custom_call.1} parent=5 // pred_check
        _
      $region62: #{tpu_custom_call.1} parent=5 // pred_check_branch
        %482 = sbr.rel (%p479) target = $region64
      $region63: #{tpu_custom_call.1} parent=5 // pred_region
        %s483 = ssub.s32 %s30, 1
        %s484 = sand.u32 %s43, 1
        %s485 = scalar_lea.sflag [#allocation3], %s484
        %s486 = sand.u32 %s43, 1
        %s487 = smul.addr %s486, 8
        %s488 = scalar_lea.vmem [#allocation2], %s487
        // Predicated region
        $region65: #{tpu_custom_call.1} parent=63 // pred_check
          %p489 = pneg %p56
        $region66: #{tpu_custom_call.1} parent=63 // pred_check_branch
          %491 = sbr.rel (%p489) target = $region68
        $region67: #{tpu_custom_call.1} parent=63 // pred_region
          %492 = dma.done %s485, 128
        $region68: #{tpu_custom_call.1} parent=63 // pred_fallthru
          _
        %s493 = sand.u32 %s35, 1
        %s494 = scalar_lea.sflag [#allocation6], %s493
        %s495 = sand.u32 %s69, 1
        %s496 = smul.addr %s495, 16
        %s497 = scalar_lea.vmem [#allocation5], %s496
        // Predicated region
        $region69: #{tpu_custom_call.1} parent=63 // pred_check
          %p498 = pneg %p82
        $region70: #{tpu_custom_call.1} parent=63 // pred_check_branch
          %500 = sbr.rel (%p498) target = $region72
        $region71: #{tpu_custom_call.1} parent=63 // pred_region
          %501 = dma.done %s494, 256
        $region72: #{tpu_custom_call.1} parent=63 // pred_fallthru
          _
        %s502 = sand.u32 %s35, 1
        %s503 = scalar_lea.sflag [#allocation6], %s502
        %s504 = sand.u32 %s95, 1
        %s505 = smul.addr %s504, 16
        %s506 = scalar_lea.vmem [#allocation7], %s505
        // Predicated region
        $region73: #{tpu_custom_call.1} parent=63 // pred_check
          %p507 = pneg %p108
        $region74: #{tpu_custom_call.1} parent=63 // pred_check_branch
          %509 = sbr.rel (%p507) target = $region76
        $region75: #{tpu_custom_call.1} parent=63 // pred_region
          %510 = dma.done %s503, 256
        $region76: #{tpu_custom_call.1} parent=63 // pred_fallthru
          _
        // Predicated region
        $region77: #{tpu_custom_call.1} parent=63 // pred_check
          %p511 = pneg %p129
        $region78: #{tpu_custom_call.1} parent=63 // pred_check_branch
          %513 = sbr.rel (%p511) target = $region80
        $region79: #{tpu_custom_call.1} parent=63 // pred_region
          %514 = dma.done [#allocation9], 512
        $region80: #{tpu_custom_call.1} parent=63 // pred_fallthru
          _
        // Predicated region
        $region81: #{tpu_custom_call.1} parent=63 // pred_check
          %p515 = pneg %p150
        $region82: #{tpu_custom_call.1} parent=63 // pred_check_branch
          %517 = sbr.rel (%p515) target = $region84
        $region83: #{tpu_custom_call.1} parent=63 // pred_region
          %518 = dma.done [#allocation9], 16
        $region84: #{tpu_custom_call.1} parent=63 // pred_fallthru
          _
        // Predicated region
        $region85: #{tpu_custom_call.1} parent=63 // pred_check
          %p519 = pneg %p171
        $region86: #{tpu_custom_call.1} parent=63 // pred_check_branch
          %521 = sbr.rel (%p519) target = $region88
        $region87: #{tpu_custom_call.1} parent=63 // pred_region
          %522 = dma.done [#allocation12], 512
        $region88: #{tpu_custom_call.1} parent=63 // pred_fallthru
          _
        // Predicated region
        $region89: #{tpu_custom_call.1} parent=63 // pred_check
          %p523 = pneg %p192
        $region90: #{tpu_custom_call.1} parent=63 // pred_check_branch
          %525 = sbr.rel (%p523) target = $region92
        $region91: #{tpu_custom_call.1} parent=63 // pred_region
          %526 = dma.done [#allocation12], 16
        $region92: #{tpu_custom_call.1} parent=63 // pred_fallthru
          _
        // Predicated region
        $region93: #{tpu_custom_call.1} parent=63 // pred_check
          %p527 = pneg %p213
        $region94: #{tpu_custom_call.1} parent=63 // pred_check_branch
          %529 = sbr.rel (%p527) target = $region96
        $region95: #{tpu_custom_call.1} parent=63 // pred_region
          %530 = dma.done [#allocation15], 512
        $region96: #{tpu_custom_call.1} parent=63 // pred_fallthru
          _
        // Predicated region
        $region97: #{tpu_custom_call.1} parent=63 // pred_check
          %p531 = pneg %p234
        $region98: #{tpu_custom_call.1} parent=63 // pred_check_branch
          %533 = sbr.rel (%p531) target = $region100
        $region99: #{tpu_custom_call.1} parent=63 // pred_region
          %534 = dma.done [#allocation15], 16
        $region100: #{tpu_custom_call.1} parent=63 // pred_fallthru
          _
        // Predicated region
        $region101: #{tpu_custom_call.1} parent=63 // pred_check
          %p535 = pneg %p255
        $region102: #{tpu_custom_call.1} parent=63 // pred_check_branch
          %537 = sbr.rel (%p535) target = $region104
        $region103: #{tpu_custom_call.1} parent=63 // pred_region
          %538 = dma.done [#allocation18], 512
        $region104: #{tpu_custom_call.1} parent=63 // pred_fallthru
          _
        // Predicated region
        $region105: #{tpu_custom_call.1} parent=63 // pred_check
          %p539 = pneg %p276
        $region106: #{tpu_custom_call.1} parent=63 // pred_check_branch
          %541 = sbr.rel (%p539) target = $region108
        $region107: #{tpu_custom_call.1} parent=63 // pred_region
          %542 = dma.done [#allocation18], 16
        $region108: #{tpu_custom_call.1} parent=63 // pred_fallthru
          _
        %s543 = sand.u32 %s43, 1
        %s544 = scalar_lea.sflag [#allocation3], %s543
        %s545 = sand.u32 %s43, 1
        %s546 = smul.addr %s545, 8
        %s547 = scalar_lea.vmem [#allocation2], %s546
        %p548 = pneg %p56
        %p549 = pneg %p53
        %s550 = sand.u32 %s35, 1
        %s551 = scalar_lea.sflag [#allocation6], %s550
        %s552 = sand.u32 %s69, 1
        %s553 = smul.addr %s552, 16
        %s554 = scalar_lea.vmem [#allocation5], %s553
        %p555 = pneg %p82
        %p556 = pneg %p79
        %s557 = sand.u32 %s35, 1
        %s558 = scalar_lea.sflag [#allocation6], %s557
        %s559 = sand.u32 %s95, 1
        %s560 = smul.addr %s559, 16
        %s561 = scalar_lea.vmem [#allocation7], %s560
        %p562 = pneg %p108
        %p563 = pneg %p105
        %p564 = pneg %p129
        %p565 = pneg %p126
        %p566 = pneg %p150
        %p567 = pneg %p147
        %p568 = pneg %p171
        %p569 = pneg %p168
        %p570 = pneg %p192
        %p571 = pneg %p189
        %p572 = pneg %p213
        %p573 = pneg %p210
        %p574 = pneg %p234
        %p575 = pneg %p231
        %p576 = pneg %p255
        %p577 = pneg %p252
        %p578 = pneg %p276
        %p579 = pneg %p273
        %p580 = pneg %p302
        %p581 = pneg %p299
        %s582 = sand.u32 %s289, 1
        %s583 = scalar_lea.sflag [#allocation4], %s582
        %s584 = sand.u32 %s289, 1
        %s585 = smul.addr %s584, 8
        %s586 = scalar_lea.vmem [#allocation20], %s585
        %v587 = vld [vmem:[%s488] sm:$0xff]
        %v588 = vld [vmem:[%s497] sm:$0xff]
        %v589 = vld [vmem:[%s497 + $0x8] sm:$0xff]
        %v590 = vld [vmem:[%s506] sm:$0xff]
        %v591 = vld [vmem:[%s506 + $0x8] sm:$0xff]
        %v592 = vld [vmem:[#allocation8] sm:$0xff]
        %v593 = vld [vmem:[#allocation8 + $0x8] sm:$0xff]
        %v594 = vld [vmem:[#allocation8 + $0x10] sm:$0xff]
        %v595 = vld [vmem:[#allocation8 + $0x18] sm:$0xff]
        %v596 = vld [vmem:[#allocation10] sm:$0x1]
        %v598 = vlaneseq
        %v599 = vshrl.u32 %v598, 7
        %v600 = vsub.s32 0, %v599
        %v601 = vrot.slane %v596, %v600
        %vm603 = vcmask 261120
        %v605 = vsel %vm603, %v587, 0
        %607 = vmatprep.subr.mxu0 0.0
        %608 = vmatpush1.msra.mxu0 %v592
        %609 = vmatprep.subr.mxu0 0.0
        %610 = vmatpush1.msra.mxu0 %v593
        %611 = vmatprep.subr.mxu0 0.0
        %612 = vmatpush1.msra.mxu0 %v594
        %613 = vmatprep.subr.mxu0 0.0
        %614 = vmatpush1.msra.mxu0 %v595
        %615 = vmatprep.subr.mxu0 0.0
        %616 = vmatpush1.msra.mxu0 0.0
        %617 = vmatprep.subr.mxu0 0.0
        %618 = vmatpush1.msra.mxu0 0.0
        %619 = vmatprep.subr.mxu0 0.0
        %620 = vmatpush1.msra.mxu0 0.0
        %621 = vmatprep.subr.mxu0 0.0
        %622 = vmatpush1.msra.mxu0 0.0
        %623 = vmatprep.subr.mxu0 0.0
        %624 = vmatpush1.msra.mxu0 0.0
        %625 = vmatprep.subr.mxu0 0.0
        %626 = vmatpush1.msra.mxu0 0.0
        %627 = vmatprep.subr.mxu0 0.0
        %628 = vmatpush1.msra.mxu0 0.0
        %629 = vmatprep.subr.mxu0 0.0
        %630 = vmatpush1.msra.mxu0 0.0
        %631 = vmatprep.subr.mxu0 0.0
        %632 = vmatpush1.msra.mxu0 0.0
        %633 = vmatprep.subr.mxu0 0.0
        %634 = vmatpush1.msra.mxu0 0.0
        %635 = vmatprep.subr.mxu0 0.0
        %636 = vmatpush1.msra.mxu0 0.0
        %637 = vmatprep.subr.mxu0 0.0
        %638 = vmatpush1.msra.mxu0 0.0
        %639 = vmatprep.subr.mxu0 0.0
        %640 = vmatpush1.msra.mxu0 0.0
        %641 = vmatprep.subr.mxu0 0.0
        %642 = vmatpush1.msra.mxu0 0.0
        %643 = vmatprep.subr.mxu0 0.0
        %644 = vmatpush1.msra.mxu0 0.0
        %645 = vmatprep.subr.mxu0 0.0
        %646 = vmatpush1.msra.mxu0 0.0
        %647 = vmatprep.subr.mxu0 0.0
        %648 = vmatpush1.msra.mxu0 0.0
        %649 = vmatprep.subr.mxu0 0.0
        %650 = vmatpush1.msra.mxu0 0.0
        %651 = vmatprep.subr.mxu0 0.0
        %652 = vmatpush1.msra.mxu0 0.0
        %653 = vmatprep.subr.mxu0 0.0
        %654 = vmatpush1.msra.mxu0 0.0
        %655 = vmatprep.subr.mxu0 0.0
        %656 = vmatpush1.msra.mxu0 0.0
        %657 = vmatprep.subr.mxu0 0.0
        %658 = vmatpush1.msra.mxu0 0.0
        %659 = vmatprep.subr.mxu0 0.0
        %660 = vmatpush1.msra.mxu0 0.0
        %661 = vmatprep.subr.mxu0 0.0
        %662 = vmatpush1.msra.mxu0 0.0
        %663 = vmatprep.subr.mxu0 0.0
        %664 = vmatpush1.msra.mxu0 0.0
        %665 = vmatprep.subr.mxu0 0.0
        %666 = vmatpush1.msra.mxu0 0.0
        %667 = vmatprep.subr.mxu0 0.0
        %668 = vmatpush1.msra.mxu0 0.0
        %669 = vmatprep.subr.mxu0 0.0
        %670 = vmatpush1.msra.mxu0 0.0
        %671 = vmatprep.mubr.f32.mxu0 0.0
        %672 = vmatmul.mubr.f32.gmra.mrb[0].mxu0 %v605
        %v673 = vpop.f32.mrb[0].mxu0
        %v674 = vadd.f32 %v601, %v673
        %v675 = vpop.f32.mrb[0].mxu0
        %676 = vdwg.mxu0
        %v677 = vld [vmem:[#allocation11] sm:$0xff]
        %v678 = vld [vmem:[#allocation11 + $0x8] sm:$0xff]
        %v679 = vld [vmem:[#allocation11 + $0x10] sm:$0xff]
        %v680 = vld [vmem:[#allocation11 + $0x18] sm:$0xff]
        %v681 = vld [vmem:[#allocation13] sm:$0x1]
        %v683 = vlaneseq
        %v684 = vshrl.u32 %v683, 7
        %v685 = vsub.s32 0, %v684
        %v686 = vrot.slane %v681, %v685
        %v689 = vsel %vm603, %v588, 0
        %v692 = vsel %vm603, %v589, 0
        %694 = vmatprep.subr.mxu0 0.0
        %695 = vmatpush1.msra.mxu0 %v677
        %696 = vmatprep.subr.mxu0 0.0
        %697 = vmatpush1.msra.mxu0 %v678
        %698 = vmatprep.subr.mxu0 0.0
        %699 = vmatpush1.msra.mxu0 %v679
        %700 = vmatprep.subr.mxu0 0.0
        %701 = vmatpush1.msra.mxu0 %v680
        %702 = vmatprep.subr.mxu0 0.0
        %703 = vmatpush1.msra.mxu0 0.0
        %704 = vmatprep.subr.mxu0 0.0
        %705 = vmatpush1.msra.mxu0 0.0
        %706 = vmatprep.subr.mxu0 0.0
        %707 = vmatpush1.msra.mxu0 0.0
        %708 = vmatprep.subr.mxu0 0.0
        %709 = vmatpush1.msra.mxu0 0.0
        %710 = vmatprep.subr.mxu0 0.0
        %711 = vmatpush1.msra.mxu0 0.0
        %712 = vmatprep.subr.mxu0 0.0
        %713 = vmatpush1.msra.mxu0 0.0
        %714 = vmatprep.subr.mxu0 0.0
        %715 = vmatpush1.msra.mxu0 0.0
        %716 = vmatprep.subr.mxu0 0.0
        %717 = vmatpush1.msra.mxu0 0.0
        %718 = vmatprep.subr.mxu0 0.0
        %719 = vmatpush1.msra.mxu0 0.0
        %720 = vmatprep.subr.mxu0 0.0
        %721 = vmatpush1.msra.mxu0 0.0
        %722 = vmatprep.subr.mxu0 0.0
        %723 = vmatpush1.msra.mxu0 0.0
        %724 = vmatprep.subr.mxu0 0.0
        %725 = vmatpush1.msra.mxu0 0.0
        %726 = vmatprep.subr.mxu0 0.0
        %727 = vmatpush1.msra.mxu0 0.0
        %728 = vmatprep.subr.mxu0 0.0
        %729 = vmatpush1.msra.mxu0 0.0
        %730 = vmatprep.subr.mxu0 0.0
        %731 = vmatpush1.msra.mxu0 0.0
        %732 = vmatprep.subr.mxu0 0.0
        %733 = vmatpush1.msra.mxu0 0.0
        %734 = vmatprep.subr.mxu0 0.0
        %735 = vmatpush1.msra.mxu0 0.0
        %736 = vmatprep.subr.mxu0 0.0
        %737 = vmatpush1.msra.mxu0 0.0
        %738 = vmatprep.subr.mxu0 0.0
        %739 = vmatpush1.msra.mxu0 0.0
        %740 = vmatprep.subr.mxu0 0.0
        %741 = vmatpush1.msra.mxu0 0.0
        %742 = vmatprep.subr.mxu0 0.0
        %743 = vmatpush1.msra.mxu0 0.0
        %744 = vmatprep.subr.mxu0 0.0
        %745 = vmatpush1.msra.mxu0 0.0
        %746 = vmatprep.subr.mxu0 0.0
        %747 = vmatpush1.msra.mxu0 0.0
        %748 = vmatprep.subr.mxu0 0.0
        %749 = vmatpush1.msra.mxu0 0.0
        %750 = vmatprep.subr.mxu0 0.0
        %751 = vmatpush1.msra.mxu0 0.0
        %752 = vmatprep.subr.mxu0 0.0
        %753 = vmatpush1.msra.mxu0 0.0
        %754 = vmatprep.subr.mxu0 0.0
        %755 = vmatpush1.msra.mxu0 0.0
        %756 = vmatprep.subr.mxu0 0.0
        %757 = vmatpush1.msra.mxu0 0.0
        %758 = vmatprep.mubr.f32.mxu0 0.0
        %759 = vmatmul.mubr.f32.gmra.mrb[0].mxu0 %v689
        %v760 = vpop.f32.mrb[0].mxu0
        %v761 = vadd.f32 %v686, %v760
        %v762 = vpop.f32.mrb[0].mxu0
        %763 = vmatprep.mubr.f32.mxu0 0.0
        %764 = vmatmul.mubr.f32.gmra.mrb[0].mxu0 %v692
        %v765 = vpop.f32.mrb[0].mxu0
        %v766 = vadd.f32 %v686, %v765
        %v767 = vpop.f32.mrb[0].mxu0
        %768 = vdwg.mxu0
        %v769 = vmul.f32 %v761, 0.17677669
        %v770 = vmul.f32 %v766, 0.17677669
        %v771 = vld [vmem:[#allocation14] sm:$0xff]
        %v772 = vld [vmem:[#allocation14 + $0x8] sm:$0xff]
        %v773 = vld [vmem:[#allocation14 + $0x10] sm:$0xff]
        %v774 = vld [vmem:[#allocation14 + $0x18] sm:$0xff]
        %v775 = vld [vmem:[#allocation16] sm:$0x1]
        %v777 = vlaneseq
        %v778 = vshrl.u32 %v777, 7
        %v779 = vsub.s32 0, %v778
        %v780 = vrot.slane %v775, %v779
        %v783 = vsel %vm603, %v590, 0
        %v786 = vsel %vm603, %v591, 0
        %788 = vmatprep.subr.mxu0 0.0
        %789 = vmatpush1.msra.mxu0 %v771
        %790 = vmatprep.subr.mxu0 0.0
        %791 = vmatpush1.msra.mxu0 %v772
        %792 = vmatprep.subr.mxu0 0.0
        %793 = vmatpush1.msra.mxu0 %v773
        %794 = vmatprep.subr.mxu0 0.0
        %795 = vmatpush1.msra.mxu0 %v774
        %796 = vmatprep.subr.mxu0 0.0
        %797 = vmatpush1.msra.mxu0 0.0
        %798 = vmatprep.subr.mxu0 0.0
        %799 = vmatpush1.msra.mxu0 0.0
        %800 = vmatprep.subr.mxu0 0.0
        %801 = vmatpush1.msra.mxu0 0.0
        %802 = vmatprep.subr.mxu0 0.0
        %803 = vmatpush1.msra.mxu0 0.0
        %804 = vmatprep.subr.mxu0 0.0
        %805 = vmatpush1.msra.mxu0 0.0
        %806 = vmatprep.subr.mxu0 0.0
        %807 = vmatpush1.msra.mxu0 0.0
        %808 = vmatprep.subr.mxu0 0.0
        %809 = vmatpush1.msra.mxu0 0.0
        %810 = vmatprep.subr.mxu0 0.0
        %811 = vmatpush1.msra.mxu0 0.0
        %812 = vmatprep.subr.mxu0 0.0
        %813 = vmatpush1.msra.mxu0 0.0
        %814 = vmatprep.subr.mxu0 0.0
        %815 = vmatpush1.msra.mxu0 0.0
        %816 = vmatprep.subr.mxu0 0.0
        %817 = vmatpush1.msra.mxu0 0.0
        %818 = vmatprep.subr.mxu0 0.0
        %819 = vmatpush1.msra.mxu0 0.0
        %820 = vmatprep.subr.mxu0 0.0
        %821 = vmatpush1.msra.mxu0 0.0
        %822 = vmatprep.subr.mxu0 0.0
        %823 = vmatpush1.msra.mxu0 0.0
        %824 = vmatprep.subr.mxu0 0.0
        %825 = vmatpush1.msra.mxu0 0.0
        %826 = vmatprep.subr.mxu0 0.0
        %827 = vmatpush1.msra.mxu0 0.0
        %828 = vmatprep.subr.mxu0 0.0
        %829 = vmatpush1.msra.mxu0 0.0
        %830 = vmatprep.subr.mxu0 0.0
        %831 = vmatpush1.msra.mxu0 0.0
        %832 = vmatprep.subr.mxu0 0.0
        %833 = vmatpush1.msra.mxu0 0.0
        %834 = vmatprep.subr.mxu0 0.0
        %835 = vmatpush1.msra.mxu0 0.0
        %836 = vmatprep.subr.mxu0 0.0
        %837 = vmatpush1.msra.mxu0 0.0
        %838 = vmatprep.subr.mxu0 0.0
        %839 = vmatpush1.msra.mxu0 0.0
        %840 = vmatprep.subr.mxu0 0.0
        %841 = vmatpush1.msra.mxu0 0.0
        %842 = vmatprep.subr.mxu0 0.0
        %843 = vmatpush1.msra.mxu0 0.0
        %844 = vmatprep.subr.mxu0 0.0
        %845 = vmatpush1.msra.mxu0 0.0
        %846 = vmatprep.subr.mxu0 0.0
        %847 = vmatpush1.msra.mxu0 0.0
        %848 = vmatprep.subr.mxu0 0.0
        %849 = vmatpush1.msra.mxu0 0.0
        %850 = vmatprep.subr.mxu0 0.0
        %851 = vmatpush1.msra.mxu0 0.0
        %852 = vmatprep.mubr.f32.mxu0 0.0
        %853 = vmatmul.mubr.f32.gmra.mrb[0].mxu0 %v783
        %v854 = vpop.f32.mrb[0].mxu0
        %v855 = vadd.f32 %v780, %v854
        %v856 = vpop.f32.mrb[0].mxu0
        %857 = vmatprep.mubr.f32.mxu0 0.0
        %858 = vmatmul.mubr.f32.gmra.mrb[0].mxu0 %v786
        %v859 = vpop.f32.mrb[0].mxu0
        %v860 = vadd.f32 %v780, %v859
        %v861 = vpop.f32.mrb[0].mxu0
        %862 = vdwg.mxu0
        %vm863 = vcmask 64512
        %v865 = vsel %vm863, %v674, 0
        %v868 = vsel %vm863, %v769, 0
        %v871 = vsel %vm863, %v770, 0
        %873 = vmatprep.subr.mxu0 0.0
        %874 = vmatpush1.xpose.msra.mxu0 %v868
        %875 = vmatprep.subr.mxu0 0.0
        %876 = vmatpush1.xpose.msra.mxu0 %v871
        %877 = vmatprep.subr.mxu0 0.0
        %878 = vmatpush1.xpose.msra.mxu0 0.0
        %879 = vmatprep.subr.mxu0 0.0
        %880 = vmatpush1.xpose.msra.mxu0 0.0
        %881 = vmatprep.subr.mxu0 0.0
        %882 = vmatpush1.xpose.msra.mxu0 0.0
        %883 = vmatprep.subr.mxu0 0.0
        %884 = vmatpush1.xpose.msra.mxu0 0.0
        %885 = vmatprep.subr.mxu0 0.0
        %886 = vmatpush1.xpose.msra.mxu0 0.0
        %887 = vmatprep.subr.mxu0 0.0
        %888 = vmatpush1.xpose.msra.mxu0 0.0
        %889 = vmatprep.subr.mxu0 0.0
        %890 = vmatpush1.xpose.msra.mxu0 0.0
        %891 = vmatprep.subr.mxu0 0.0
        %892 = vmatpush1.xpose.msra.mxu0 0.0
        %893 = vmatprep.subr.mxu0 0.0
        %894 = vmatpush1.xpose.msra.mxu0 0.0
        %895 = vmatprep.subr.mxu0 0.0
        %896 = vmatpush1.xpose.msra.mxu0 0.0
        %897 = vmatprep.subr.mxu0 0.0
        %898 = vmatpush1.xpose.msra.mxu0 0.0
        %899 = vmatprep.subr.mxu0 0.0
        %900 = vmatpush1.xpose.msra.mxu0 0.0
        %901 = vmatprep.subr.mxu0 0.0
        %902 = vmatpush1.xpose.msra.mxu0 0.0
        %903 = vmatprep.subr.mxu0 0.0
        %904 = vmatpush1.xpose.msra.mxu0 0.0
        %905 = vmatprep.subr.mxu0 0.0
        %906 = vmatpush1.xpose.msra.mxu0 0.0
        %907 = vmatprep.subr.mxu0 0.0
        %908 = vmatpush1.xpose.msra.mxu0 0.0
        %909 = vmatprep.subr.mxu0 0.0
        %910 = vmatpush1.xpose.msra.mxu0 0.0
        %911 = vmatprep.subr.mxu0 0.0
        %912 = vmatpush1.xpose.msra.mxu0 0.0
        %913 = vmatprep.subr.mxu0 0.0
        %914 = vmatpush1.xpose.msra.mxu0 0.0
        %915 = vmatprep.subr.mxu0 0.0
        %916 = vmatpush1.xpose.msra.mxu0 0.0
        %917 = vmatprep.subr.mxu0 0.0
        %918 = vmatpush1.xpose.msra.mxu0 0.0
        %919 = vmatprep.subr.mxu0 0.0
        %920 = vmatpush1.xpose.msra.mxu0 0.0
        %921 = vmatprep.subr.mxu0 0.0
        %922 = vmatpush1.xpose.msra.mxu0 0.0
        %923 = vmatprep.subr.mxu0 0.0
        %924 = vmatpush1.xpose.msra.mxu0 0.0
        %925 = vmatprep.subr.mxu0 0.0
        %926 = vmatpush1.xpose.msra.mxu0 0.0
        %927 = vmatprep.subr.mxu0 0.0
        %928 = vmatpush1.xpose.msra.mxu0 0.0
        %929 = vmatprep.subr.mxu0 0.0
        %930 = vmatpush1.xpose.msra.mxu0 0.0
        %931 = vmatprep.subr.mxu0 0.0
        %932 = vmatpush1.xpose.msra.mxu0 0.0
        %933 = vmatprep.subr.mxu0 0.0
        %934 = vmatpush1.xpose.msra.mxu0 0.0
        %935 = vmatprep.subr.mxu0 0.0
        %936 = vmatpush1.xpose.msra.mxu0 0.0
        %937 = vmatprep.mubr.f32.mxu0 0.0
        %938 = vmatmul.mubr.f32.gmra.mrb[0].mxu0 %v865
        %v939 = vpop.f32.mrb[0].mxu0
        %v940 = vadd.f32 0.0, %v939
        %v941 = vpop.f32.mrb[0].mxu0
        %942 = vdwg.mxu0
        %vm943 = vcmask 130048
        %v944 = vsel %vm943, %v940, -inf
        %945 = vmax.xlane.f32.xlu0 %v944
        %v946 = vpop.xlane.xlu0 %945
        %v947 = vsub.f32 %v940, %v946
        %v948 = vmul.f32 %v947, 1.442695
        %v949 = vpow.pop %v948
        %v950 = vsel %vm943, %v949, 0.0
        %951 = vadd.xlane.f32.xlu0 %v950
        %v952 = vpop.xlane.xlu0 %951
        %v953 = vrcp.pop %v952
        %v954 = vmul.f32 %v949, %v953
        %v956 = vsel %vm943, %v954, 0
        %958 = vmatprep.subr.mxu0 0.0
        %959 = vmatpush1.msra.mxu0 %v855
        %960 = vmatprep.subr.mxu0 0.0
        %961 = vmatpush1.msra.mxu0 %v860
        %962 = vmatprep.subr.mxu0 0.0
        %963 = vmatpush1.msra.mxu0 0.0
        %964 = vmatprep.subr.mxu0 0.0
        %965 = vmatpush1.msra.mxu0 0.0
        %966 = vmatprep.subr.mxu0 0.0
        %967 = vmatpush1.msra.mxu0 0.0
        %968 = vmatprep.subr.mxu0 0.0
        %969 = vmatpush1.msra.mxu0 0.0
        %970 = vmatprep.subr.mxu0 0.0
        %971 = vmatpush1.msra.mxu0 0.0
        %972 = vmatprep.subr.mxu0 0.0
        %973 = vmatpush1.msra.mxu0 0.0
        %974 = vmatprep.subr.mxu0 0.0
        %975 = vmatpush1.msra.mxu0 0.0
        %976 = vmatprep.subr.mxu0 0.0
        %977 = vmatpush1.msra.mxu0 0.0
        %978 = vmatprep.subr.mxu0 0.0
        %979 = vmatpush1.msra.mxu0 0.0
        %980 = vmatprep.subr.mxu0 0.0
        %981 = vmatpush1.msra.mxu0 0.0
        %982 = vmatprep.subr.mxu0 0.0
        %983 = vmatpush1.msra.mxu0 0.0
        %984 = vmatprep.subr.mxu0 0.0
        %985 = vmatpush1.msra.mxu0 0.0
        %986 = vmatprep.subr.mxu0 0.0
        %987 = vmatpush1.msra.mxu0 0.0
        %988 = vmatprep.subr.mxu0 0.0
        %989 = vmatpush1.msra.mxu0 0.0
        %990 = vmatprep.subr.mxu0 0.0
        %991 = vmatpush1.msra.mxu0 0.0
        %992 = vmatprep.subr.mxu0 0.0
        %993 = vmatpush1.msra.mxu0 0.0
        %994 = vmatprep.subr.mxu0 0.0
        %995 = vmatpush1.msra.mxu0 0.0
        %996 = vmatprep.subr.mxu0 0.0
        %997 = vmatpush1.msra.mxu0 0.0
        %998 = vmatprep.subr.mxu0 0.0
        %999 = vmatpush1.msra.mxu0 0.0
        %1000 = vmatprep.subr.mxu0 0.0
        %1001 = vmatpush1.msra.mxu0 0.0
        %1002 = vmatprep.subr.mxu0 0.0
        %1003 = vmatpush1.msra.mxu0 0.0
        %1004 = vmatprep.subr.mxu0 0.0
        %1005 = vmatpush1.msra.mxu0 0.0
        %1006 = vmatprep.subr.mxu0 0.0
        %1007 = vmatpush1.msra.mxu0 0.0
        %1008 = vmatprep.subr.mxu0 0.0
        %1009 = vmatpush1.msra.mxu0 0.0
        %1010 = vmatprep.subr.mxu0 0.0
        %1011 = vmatpush1.msra.mxu0 0.0
        %1012 = vmatprep.subr.mxu0 0.0
        %1013 = vmatpush1.msra.mxu0 0.0
        %1014 = vmatprep.subr.mxu0 0.0
        %1015 = vmatpush1.msra.mxu0 0.0
        %1016 = vmatprep.subr.mxu0 0.0
        %1017 = vmatpush1.msra.mxu0 0.0
        %1018 = vmatprep.subr.mxu0 0.0
        %1019 = vmatpush1.msra.mxu0 0.0
        %1020 = vmatprep.subr.mxu0 0.0
        %1021 = vmatpush1.msra.mxu0 0.0
        %1022 = vmatprep.mubr.f32.mxu0 0.0
        %1023 = vmatmul.mubr.f32.gmra.mrb[0].mxu0 %v956
        %v1024 = vpop.f32.mrb[0].mxu0
        %v1025 = vadd.f32 0.0, %v1024
        %v1026 = vpop.f32.mrb[0].mxu0
        %1027 = vdwg.mxu0
        %1028 = vrot.lane.b32.xlu0 %v674, 120
        %v1029 = vpop.permute.xlu0 %1028
        %1030 = vrot.lane.b32.xlu0 %v769, 120
        %v1031 = vpop.permute.xlu0 %1030
        %1032 = vrot.lane.b32.xlu0 %v770, 120
        %v1033 = vpop.permute.xlu0 %1032
        %v1034 = vsel %vm863, %v1029, 0
        %v1036 = vsel %vm863, %v1031, 0
        %v1038 = vsel %vm863, %v1033, 0
        %1040 = vmatprep.subr.mxu0 0.0
        %1041 = vmatpush1.xpose.msra.mxu0 %v1036
        %1042 = vmatprep.subr.mxu0 0.0
        %1043 = vmatpush1.xpose.msra.mxu0 %v1038
        %1044 = vmatprep.subr.mxu0 0.0
        %1045 = vmatpush1.xpose.msra.mxu0 0.0
        %1046 = vmatprep.subr.mxu0 0.0
        %1047 = vmatpush1.xpose.msra.mxu0 0.0
        %1048 = vmatprep.subr.mxu0 0.0
        %1049 = vmatpush1.xpose.msra.mxu0 0.0
        %1050 = vmatprep.subr.mxu0 0.0
        %1051 = vmatpush1.xpose.msra.mxu0 0.0
        %1052 = vmatprep.subr.mxu0 0.0
        %1053 = vmatpush1.xpose.msra.mxu0 0.0
        %1054 = vmatprep.subr.mxu0 0.0
        %1055 = vmatpush1.xpose.msra.mxu0 0.0
        %1056 = vmatprep.subr.mxu0 0.0
        %1057 = vmatpush1.xpose.msra.mxu0 0.0
        %1058 = vmatprep.subr.mxu0 0.0
        %1059 = vmatpush1.xpose.msra.mxu0 0.0
        %1060 = vmatprep.subr.mxu0 0.0
        %1061 = vmatpush1.xpose.msra.mxu0 0.0
        %1062 = vmatprep.subr.mxu0 0.0
        %1063 = vmatpush1.xpose.msra.mxu0 0.0
        %1064 = vmatprep.subr.mxu0 0.0
        %1065 = vmatpush1.xpose.msra.mxu0 0.0
        %1066 = vmatprep.subr.mxu0 0.0
        %1067 = vmatpush1.xpose.msra.mxu0 0.0
        %1068 = vmatprep.subr.mxu0 0.0
        %1069 = vmatpush1.xpose.msra.mxu0 0.0
        %1070 = vmatprep.subr.mxu0 0.0
        %1071 = vmatpush1.xpose.msra.mxu0 0.0
        %1072 = vmatprep.subr.mxu0 0.0
        %1073 = vmatpush1.xpose.msra.mxu0 0.0
        %1074 = vmatprep.subr.mxu0 0.0
        %1075 = vmatpush1.xpose.msra.mxu0 0.0
        %1076 = vmatprep.subr.mxu0 0.0
        %1077 = vmatpush1.xpose.msra.mxu0 0.0
        %1078 = vmatprep.subr.mxu0 0.0
        %1079 = vmatpush1.xpose.msra.mxu0 0.0
        %1080 = vmatprep.subr.mxu0 0.0
        %1081 = vmatpush1.xpose.msra.mxu0 0.0
        %1082 = vmatprep.subr.mxu0 0.0
        %1083 = vmatpush1.xpose.msra.mxu0 0.0
        %1084 = vmatprep.subr.mxu0 0.0
        %1085 = vmatpush1.xpose.msra.mxu0 0.0
        %1086 = vmatprep.subr.mxu0 0.0
        %1087 = vmatpush1.xpose.msra.mxu0 0.0
        %1088 = vmatprep.subr.mxu0 0.0
        %1089 = vmatpush1.xpose.msra.mxu0 0.0
        %1090 = vmatprep.subr.mxu0 0.0
        %1091 = vmatpush1.xpose.msra.mxu0 0.0
        %1092 = vmatprep.subr.mxu0 0.0
        %1093 = vmatpush1.xpose.msra.mxu0 0.0
        %1094 = vmatprep.subr.mxu0 0.0
        %1095 = vmatpush1.xpose.msra.mxu0 0.0
        %1096 = vmatprep.subr.mxu0 0.0
        %1097 = vmatpush1.xpose.msra.mxu0 0.0
        %1098 = vmatprep.subr.mxu0 0.0
        %1099 = vmatpush1.xpose.msra.mxu0 0.0
        %1100 = vmatprep.subr.mxu0 0.0
        %1101 = vmatpush1.xpose.msra.mxu0 0.0
        %1102 = vmatprep.subr.mxu0 0.0
        %1103 = vmatpush1.xpose.msra.mxu0 0.0
        %1104 = vmatprep.mubr.f32.mxu0 0.0
        %1105 = vmatmul.mubr.f32.gmra.mrb[0].mxu0 %v1034
        %v1106 = vpop.f32.mrb[0].mxu0
        %v1107 = vadd.f32 0.0, %v1106
        %v1108 = vpop.f32.mrb[0].mxu0
        %1109 = vdwg.mxu0
        %v1110 = vsel %vm943, %v1107, -inf
        %1111 = vmax.xlane.f32.xlu0 %v1110
        %v1112 = vpop.xlane.xlu0 %1111
        %v1113 = vsub.f32 %v1107, %v1112
        %v1114 = vmul.f32 %v1113, 1.442695
        %v1115 = vpow.pop %v1114
        %v1116 = vsel %vm943, %v1115, 0.0
        %1117 = vadd.xlane.f32.xlu0 %v1116
        %v1118 = vpop.xlane.xlu0 %1117
        %v1119 = vrcp.pop %v1118
        %v1120 = vmul.f32 %v1115, %v1119
        %1123 = vrot.lane.b32.xlu0 %v855, 120
        %v1124 = vpop.permute.xlu0 %1123
        %1125 = vrot.lane.b32.xlu0 %v860, 120
        %v1126 = vpop.permute.xlu0 %1125
        %v1130 = vsel %vm943, %v1120, 0
        %1132 = vmatprep.subr.mxu0 0.0
        %1133 = vmatpush1.msra.mxu0 %v1124
        %1134 = vmatprep.subr.mxu0 0.0
        %1135 = vmatpush1.msra.mxu0 %v1126
        %1136 = vmatprep.subr.mxu0 0.0
        %1137 = vmatpush1.msra.mxu0 0.0
        %1138 = vmatprep.subr.mxu0 0.0
        %1139 = vmatpush1.msra.mxu0 0.0
        %1140 = vmatprep.subr.mxu0 0.0
        %1141 = vmatpush1.msra.mxu0 0.0
        %1142 = vmatprep.subr.mxu0 0.0
        %1143 = vmatpush1.msra.mxu0 0.0
        %1144 = vmatprep.subr.mxu0 0.0
        %1145 = vmatpush1.msra.mxu0 0.0
        %1146 = vmatprep.subr.mxu0 0.0
        %1147 = vmatpush1.msra.mxu0 0.0
        %1148 = vmatprep.subr.mxu0 0.0
        %1149 = vmatpush1.msra.mxu0 0.0
        %1150 = vmatprep.subr.mxu0 0.0
        %1151 = vmatpush1.msra.mxu0 0.0
        %1152 = vmatprep.subr.mxu0 0.0
        %1153 = vmatpush1.msra.mxu0 0.0
        %1154 = vmatprep.subr.mxu0 0.0
        %1155 = vmatpush1.msra.mxu0 0.0
        %1156 = vmatprep.subr.mxu0 0.0
        %1157 = vmatpush1.msra.mxu0 0.0
        %1158 = vmatprep.subr.mxu0 0.0
        %1159 = vmatpush1.msra.mxu0 0.0
        %1160 = vmatprep.subr.mxu0 0.0
        %1161 = vmatpush1.msra.mxu0 0.0
        %1162 = vmatprep.subr.mxu0 0.0
        %1163 = vmatpush1.msra.mxu0 0.0
        %1164 = vmatprep.subr.mxu0 0.0
        %1165 = vmatpush1.msra.mxu0 0.0
        %1166 = vmatprep.subr.mxu0 0.0
        %1167 = vmatpush1.msra.mxu0 0.0
        %1168 = vmatprep.subr.mxu0 0.0
        %1169 = vmatpush1.msra.mxu0 0.0
        %1170 = vmatprep.subr.mxu0 0.0
        %1171 = vmatpush1.msra.mxu0 0.0
        %1172 = vmatprep.subr.mxu0 0.0
        %1173 = vmatpush1.msra.mxu0 0.0
        %1174 = vmatprep.subr.mxu0 0.0
        %1175 = vmatpush1.msra.mxu0 0.0
        %1176 = vmatprep.subr.mxu0 0.0
        %1177 = vmatpush1.msra.mxu0 0.0
        %1178 = vmatprep.subr.mxu0 0.0
        %1179 = vmatpush1.msra.mxu0 0.0
        %1180 = vmatprep.subr.mxu0 0.0
        %1181 = vmatpush1.msra.mxu0 0.0
        %1182 = vmatprep.subr.mxu0 0.0
        %1183 = vmatpush1.msra.mxu0 0.0
        %1184 = vmatprep.subr.mxu0 0.0
        %1185 = vmatpush1.msra.mxu0 0.0
        %1186 = vmatprep.subr.mxu0 0.0
        %1187 = vmatpush1.msra.mxu0 0.0
        %1188 = vmatprep.subr.mxu0 0.0
        %1189 = vmatpush1.msra.mxu0 0.0
        %1190 = vmatprep.subr.mxu0 0.0
        %1191 = vmatpush1.msra.mxu0 0.0
        %1192 = vmatprep.subr.mxu0 0.0
        %1193 = vmatpush1.msra.mxu0 0.0
        %1194 = vmatprep.subr.mxu0 0.0
        %1195 = vmatpush1.msra.mxu0 0.0
        %1196 = vmatprep.mubr.f32.mxu0 0.0
        %1197 = vmatmul.mubr.f32.gmra.mrb[0].mxu0 %v1130
        %v1198 = vpop.f32.mrb[0].mxu0
        %v1199 = vadd.f32 0.0, %v1198
        %v1200 = vpop.f32.mrb[0].mxu0
        %1201 = vdwg.mxu0
        %1202 = vrot.lane.b32.xlu0 %v674, 112
        %v1203 = vpop.permute.xlu0 %1202
        %1204 = vrot.lane.b32.xlu0 %v769, 112
        %v1205 = vpop.permute.xlu0 %1204
        %1206 = vrot.lane.b32.xlu0 %v770, 112
        %v1207 = vpop.permute.xlu0 %1206
        %v1208 = vsel %vm863, %v1203, 0
        %v1210 = vsel %vm863, %v1205, 0
        %v1212 = vsel %vm863, %v1207, 0
        %1214 = vmatprep.subr.mxu0 0.0
        %1215 = vmatpush1.xpose.msra.mxu0 %v1210
        %1216 = vmatprep.subr.mxu0 0.0
        %1217 = vmatpush1.xpose.msra.mxu0 %v1212
        %1218 = vmatprep.subr.mxu0 0.0
        %1219 = vmatpush1.xpose.msra.mxu0 0.0
        %1220 = vmatprep.subr.mxu0 0.0
        %1221 = vmatpush1.xpose.msra.mxu0 0.0
        %1222 = vmatprep.subr.mxu0 0.0
        %1223 = vmatpush1.xpose.msra.mxu0 0.0
        %1224 = vmatprep.subr.mxu0 0.0
        %1225 = vmatpush1.xpose.msra.mxu0 0.0
        %1226 = vmatprep.subr.mxu0 0.0
        %1227 = vmatpush1.xpose.msra.mxu0 0.0
        %1228 = vmatprep.subr.mxu0 0.0
        %1229 = vmatpush1.xpose.msra.mxu0 0.0
        %1230 = vmatprep.subr.mxu0 0.0
        %1231 = vmatpush1.xpose.msra.mxu0 0.0
        %1232 = vmatprep.subr.mxu0 0.0
        %1233 = vmatpush1.xpose.msra.mxu0 0.0
        %1234 = vmatprep.subr.mxu0 0.0
        %1235 = vmatpush1.xpose.msra.mxu0 0.0
        %1236 = vmatprep.subr.mxu0 0.0
        %1237 = vmatpush1.xpose.msra.mxu0 0.0
        %1238 = vmatprep.subr.mxu0 0.0
        %1239 = vmatpush1.xpose.msra.mxu0 0.0
        %1240 = vmatprep.subr.mxu0 0.0
        %1241 = vmatpush1.xpose.msra.mxu0 0.0
        %1242 = vmatprep.subr.mxu0 0.0
        %1243 = vmatpush1.xpose.msra.mxu0 0.0
        %1244 = vmatprep.subr.mxu0 0.0
        %1245 = vmatpush1.xpose.msra.mxu0 0.0
        %1246 = vmatprep.subr.mxu0 0.0
        %1247 = vmatpush1.xpose.msra.mxu0 0.0
        %1248 = vmatprep.subr.mxu0 0.0
        %1249 = vmatpush1.xpose.msra.mxu0 0.0
        %1250 = vmatprep.subr.mxu0 0.0
        %1251 = vmatpush1.xpose.msra.mxu0 0.0
        %1252 = vmatprep.subr.mxu0 0.0
        %1253 = vmatpush1.xpose.msra.mxu0 0.0
        %1254 = vmatprep.subr.mxu0 0.0
        %1255 = vmatpush1.xpose.msra.mxu0 0.0
        %1256 = vmatprep.subr.mxu0 0.0
        %1257 = vmatpush1.xpose.msra.mxu0 0.0
        %1258 = vmatprep.subr.mxu0 0.0
        %1259 = vmatpush1.xpose.msra.mxu0 0.0
        %1260 = vmatprep.subr.mxu0 0.0
        %1261 = vmatpush1.xpose.msra.mxu0 0.0
        %1262 = vmatprep.subr.mxu0 0.0
        %1263 = vmatpush1.xpose.msra.mxu0 0.0
        %1264 = vmatprep.subr.mxu0 0.0
        %1265 = vmatpush1.xpose.msra.mxu0 0.0
        %1266 = vmatprep.subr.mxu0 0.0
        %1267 = vmatpush1.xpose.msra.mxu0 0.0
        %1268 = vmatprep.subr.mxu0 0.0
        %1269 = vmatpush1.xpose.msra.mxu0 0.0
        %1270 = vmatprep.subr.mxu0 0.0
        %1271 = vmatpush1.xpose.msra.mxu0 0.0
        %1272 = vmatprep.subr.mxu0 0.0
        %1273 = vmatpush1.xpose.msra.mxu0 0.0
        %1274 = vmatprep.subr.mxu0 0.0
        %1275 = vmatpush1.xpose.msra.mxu0 0.0
        %1276 = vmatprep.subr.mxu0 0.0
        %1277 = vmatpush1.xpose.msra.mxu0 0.0
        %1278 = vmatprep.mubr.f32.mxu0 0.0
        %1279 = vmatmul.mubr.f32.gmra.mrb[0].mxu0 %v1208
        %v1280 = vpop.f32.mrb[0].mxu0
        %v1281 = vadd.f32 0.0, %v1280
        %v1282 = vpop.f32.mrb[0].mxu0
        %1283 = vdwg.mxu0
        %v1284 = vsel %vm943, %v1281, -inf
        %1285 = vmax.xlane.f32.xlu0 %v1284
        %v1286 = vpop.xlane.xlu0 %1285
        %v1287 = vsub.f32 %v1281, %v1286
        %v1288 = vmul.f32 %v1287, 1.442695
        %v1289 = vpow.pop %v1288
        %v1290 = vsel %vm943, %v1289, 0.0
        %1291 = vadd.xlane.f32.xlu0 %v1290
        %v1292 = vpop.xlane.xlu0 %1291
        %v1293 = vrcp.pop %v1292
        %v1294 = vmul.f32 %v1289, %v1293
        %1295 = vrot.lane.b32.xlu0 %v855, 112
        %v1296 = vpop.permute.xlu0 %1295
        %1297 = vrot.lane.b32.xlu0 %v860, 112
        %v1298 = vpop.permute.xlu0 %1297
        %v1302 = vsel %vm943, %v1294, 0
        %1304 = vmatprep.subr.mxu0 0.0
        %1305 = vmatpush1.msra.mxu0 %v1296
        %1306 = vmatprep.subr.mxu0 0.0
        %1307 = vmatpush1.msra.mxu0 %v1298
        %1308 = vmatprep.subr.mxu0 0.0
        %1309 = vmatpush1.msra.mxu0 0.0
        %1310 = vmatprep.subr.mxu0 0.0
        %1311 = vmatpush1.msra.mxu0 0.0
        %1312 = vmatprep.subr.mxu0 0.0
        %1313 = vmatpush1.msra.mxu0 0.0
        %1314 = vmatprep.subr.mxu0 0.0
        %1315 = vmatpush1.msra.mxu0 0.0
        %1316 = vmatprep.subr.mxu0 0.0
        %1317 = vmatpush1.msra.mxu0 0.0
        %1318 = vmatprep.subr.mxu0 0.0
        %1319 = vmatpush1.msra.mxu0 0.0
        %1320 = vmatprep.subr.mxu0 0.0
        %1321 = vmatpush1.msra.mxu0 0.0
        %1322 = vmatprep.subr.mxu0 0.0
        %1323 = vmatpush1.msra.mxu0 0.0
        %1324 = vmatprep.subr.mxu0 0.0
        %1325 = vmatpush1.msra.mxu0 0.0
        %1326 = vmatprep.subr.mxu0 0.0
        %1327 = vmatpush1.msra.mxu0 0.0
        %1328 = vmatprep.subr.mxu0 0.0
        %1329 = vmatpush1.msra.mxu0 0.0
        %1330 = vmatprep.subr.mxu0 0.0
        %1331 = vmatpush1.msra.mxu0 0.0
        %1332 = vmatprep.subr.mxu0 0.0
        %1333 = vmatpush1.msra.mxu0 0.0
        %1334 = vmatprep.subr.mxu0 0.0
        %1335 = vmatpush1.msra.mxu0 0.0
        %1336 = vmatprep.subr.mxu0 0.0
        %1337 = vmatpush1.msra.mxu0 0.0
        %1338 = vmatprep.subr.mxu0 0.0
        %1339 = vmatpush1.msra.mxu0 0.0
        %1340 = vmatprep.subr.mxu0 0.0
        %1341 = vmatpush1.msra.mxu0 0.0
        %1342 = vmatprep.subr.mxu0 0.0
        %1343 = vmatpush1.msra.mxu0 0.0
        %1344 = vmatprep.subr.mxu0 0.0
        %1345 = vmatpush1.msra.mxu0 0.0
        %1346 = vmatprep.subr.mxu0 0.0
        %1347 = vmatpush1.msra.mxu0 0.0
        %1348 = vmatprep.subr.mxu0 0.0
        %1349 = vmatpush1.msra.mxu0 0.0
        %1350 = vmatprep.subr.mxu0 0.0
        %1351 = vmatpush1.msra.mxu0 0.0
        %1352 = vmatprep.subr.mxu0 0.0
        %1353 = vmatpush1.msra.mxu0 0.0
        %1354 = vmatprep.subr.mxu0 0.0
        %1355 = vmatpush1.msra.mxu0 0.0
        %1356 = vmatprep.subr.mxu0 0.0
        %1357 = vmatpush1.msra.mxu0 0.0
        %1358 = vmatprep.subr.mxu0 0.0
        %1359 = vmatpush1.msra.mxu0 0.0
        %1360 = vmatprep.subr.mxu0 0.0
        %1361 = vmatpush1.msra.mxu0 0.0
        %1362 = vmatprep.subr.mxu0 0.0
        %1363 = vmatpush1.msra.mxu0 0.0
        %1364 = vmatprep.subr.mxu0 0.0
        %1365 = vmatpush1.msra.mxu0 0.0
        %1366 = vmatprep.subr.mxu0 0.0
        %1367 = vmatpush1.msra.mxu0 0.0
        %1368 = vmatprep.mubr.f32.mxu0 0.0
        %1369 = vmatmul.mubr.f32.gmra.mrb[0].mxu0 %v1302
        %v1370 = vpop.f32.mrb[0].mxu0
        %v1371 = vadd.f32 0.0, %v1370
        %v1372 = vpop.f32.mrb[0].mxu0
        %1373 = vdwg.mxu0
        %1374 = vrot.lane.b32.xlu0 %v674, 104
        %v1375 = vpop.permute.xlu0 %1374
        %1376 = vrot.lane.b32.xlu0 %v769, 104
        %v1377 = vpop.permute.xlu0 %1376
        %1378 = vrot.lane.b32.xlu0 %v770, 104
        %v1379 = vpop.permute.xlu0 %1378
        %v1380 = vsel %vm863, %v1375, 0
        %v1382 = vsel %vm863, %v1377, 0
        %v1384 = vsel %vm863, %v1379, 0
        %1386 = vmatprep.subr.mxu0 0.0
        %1387 = vmatpush1.xpose.msra.mxu0 %v1382
        %1388 = vmatprep.subr.mxu0 0.0
        %1389 = vmatpush1.xpose.msra.mxu0 %v1384
        %1390 = vmatprep.subr.mxu0 0.0
        %1391 = vmatpush1.xpose.msra.mxu0 0.0
        %1392 = vmatprep.subr.mxu0 0.0
        %1393 = vmatpush1.xpose.msra.mxu0 0.0
        %1394 = vmatprep.subr.mxu0 0.0
        %1395 = vmatpush1.xpose.msra.mxu0 0.0
        %1396 = vmatprep.subr.mxu0 0.0
        %1397 = vmatpush1.xpose.msra.mxu0 0.0
        %1398 = vmatprep.subr.mxu0 0.0
        %1399 = vmatpush1.xpose.msra.mxu0 0.0
        %1400 = vmatprep.subr.mxu0 0.0
        %1401 = vmatpush1.xpose.msra.mxu0 0.0
        %1402 = vmatprep.subr.mxu0 0.0
        %1403 = vmatpush1.xpose.msra.mxu0 0.0
        %1404 = vmatprep.subr.mxu0 0.0
        %1405 = vmatpush1.xpose.msra.mxu0 0.0
        %1406 = vmatprep.subr.mxu0 0.0
        %1407 = vmatpush1.xpose.msra.mxu0 0.0
        %1408 = vmatprep.subr.mxu0 0.0
        %1409 = vmatpush1.xpose.msra.mxu0 0.0
        %1410 = vmatprep.subr.mxu0 0.0
        %1411 = vmatpush1.xpose.msra.mxu0 0.0
        %1412 = vmatprep.subr.mxu0 0.0
        %1413 = vmatpush1.xpose.msra.mxu0 0.0
        %1414 = vmatprep.subr.mxu0 0.0
        %1415 = vmatpush1.xpose.msra.mxu0 0.0
        %1416 = vmatprep.subr.mxu0 0.0
        %1417 = vmatpush1.xpose.msra.mxu0 0.0
        %1418 = vmatprep.subr.mxu0 0.0
        %1419 = vmatpush1.xpose.msra.mxu0 0.0
        %1420 = vmatprep.subr.mxu0 0.0
        %1421 = vmatpush1.xpose.msra.mxu0 0.0
        %1422 = vmatprep.subr.mxu0 0.0
        %1423 = vmatpush1.xpose.msra.mxu0 0.0
        %1424 = vmatprep.subr.mxu0 0.0
        %1425 = vmatpush1.xpose.msra.mxu0 0.0
        %1426 = vmatprep.subr.mxu0 0.0
        %1427 = vmatpush1.xpose.msra.mxu0 0.0
        %1428 = vmatprep.subr.mxu0 0.0
        %1429 = vmatpush1.xpose.msra.mxu0 0.0
        %1430 = vmatprep.subr.mxu0 0.0
        %1431 = vmatpush1.xpose.msra.mxu0 0.0
        %1432 = vmatprep.subr.mxu0 0.0
        %1433 = vmatpush1.xpose.msra.mxu0 0.0
        %1434 = vmatprep.subr.mxu0 0.0
        %1435 = vmatpush1.xpose.msra.mxu0 0.0
        %1436 = vmatprep.subr.mxu0 0.0
        %1437 = vmatpush1.xpose.msra.mxu0 0.0
        %1438 = vmatprep.subr.mxu0 0.0
        %1439 = vmatpush1.xpose.msra.mxu0 0.0
        %1440 = vmatprep.subr.mxu0 0.0
        %1441 = vmatpush1.xpose.msra.mxu0 0.0
        %1442 = vmatprep.subr.mxu0 0.0
        %1443 = vmatpush1.xpose.msra.mxu0 0.0
        %1444 = vmatprep.subr.mxu0 0.0
        %1445 = vmatpush1.xpose.msra.mxu0 0.0
        %1446 = vmatprep.subr.mxu0 0.0
        %1447 = vmatpush1.xpose.msra.mxu0 0.0
        %1448 = vmatprep.subr.mxu0 0.0
        %1449 = vmatpush1.xpose.msra.mxu0 0.0
        %1450 = vmatprep.mubr.f32.mxu0 0.0
        %1451 = vmatmul.mubr.f32.gmra.mrb[0].mxu0 %v1380
        %v1452 = vpop.f32.mrb[0].mxu0
        %v1453 = vadd.f32 0.0, %v1452
        %v1454 = vpop.f32.mrb[0].mxu0
        %1455 = vdwg.mxu0
        %v1456 = vsel %vm943, %v1453, -inf
        %1457 = vmax.xlane.f32.xlu0 %v1456
        %v1458 = vpop.xlane.xlu0 %1457
        %v1459 = vsub.f32 %v1453, %v1458
        %v1460 = vmul.f32 %v1459, 1.442695
        %v1461 = vpow.pop %v1460
        %v1462 = vsel %vm943, %v1461, 0.0
        %1463 = vadd.xlane.f32.xlu0 %v1462
        %v1464 = vpop.xlane.xlu0 %1463
        %v1465 = vrcp.pop %v1464
        %v1466 = vmul.f32 %v1461, %v1465
        %1467 = vrot.lane.b32.xlu0 %v855, 104
        %v1468 = vpop.permute.xlu0 %1467
        %1469 = vrot.lane.b32.xlu0 %v860, 104
        %v1470 = vpop.permute.xlu0 %1469
        %v1474 = vsel %vm943, %v1466, 0
        %1476 = vmatprep.subr.mxu0 0.0
        %1477 = vmatpush1.msra.mxu0 %v1468
        %1478 = vmatprep.subr.mxu0 0.0
        %1479 = vmatpush1.msra.mxu0 %v1470
        %1480 = vmatprep.subr.mxu0 0.0
        %1481 = vmatpush1.msra.mxu0 0.0
        %1482 = vmatprep.subr.mxu0 0.0
        %1483 = vmatpush1.msra.mxu0 0.0
        %1484 = vmatprep.subr.mxu0 0.0
        %1485 = vmatpush1.msra.mxu0 0.0
        %1486 = vmatprep.subr.mxu0 0.0
        %1487 = vmatpush1.msra.mxu0 0.0
        %1488 = vmatprep.subr.mxu0 0.0
        %1489 = vmatpush1.msra.mxu0 0.0
        %1490 = vmatprep.subr.mxu0 0.0
        %1491 = vmatpush1.msra.mxu0 0.0
        %1492 = vmatprep.subr.mxu0 0.0
        %1493 = vmatpush1.msra.mxu0 0.0
        %1494 = vmatprep.subr.mxu0 0.0
        %1495 = vmatpush1.msra.mxu0 0.0
        %1496 = vmatprep.subr.mxu0 0.0
        %1497 = vmatpush1.msra.mxu0 0.0
        %1498 = vmatprep.subr.mxu0 0.0
        %1499 = vmatpush1.msra.mxu0 0.0
        %1500 = vmatprep.subr.mxu0 0.0
        %1501 = vmatpush1.msra.mxu0 0.0
        %1502 = vmatprep.subr.mxu0 0.0
        %1503 = vmatpush1.msra.mxu0 0.0
        %1504 = vmatprep.subr.mxu0 0.0
        %1505 = vmatpush1.msra.mxu0 0.0
        %1506 = vmatprep.subr.mxu0 0.0
        %1507 = vmatpush1.msra.mxu0 0.0
        %1508 = vmatprep.subr.mxu0 0.0
        %1509 = vmatpush1.msra.mxu0 0.0
        %1510 = vmatprep.subr.mxu0 0.0
        %1511 = vmatpush1.msra.mxu0 0.0
        %1512 = vmatprep.subr.mxu0 0.0
        %1513 = vmatpush1.msra.mxu0 0.0
        %1514 = vmatprep.subr.mxu0 0.0
        %1515 = vmatpush1.msra.mxu0 0.0
        %1516 = vmatprep.subr.mxu0 0.0
        %1517 = vmatpush1.msra.mxu0 0.0
        %1518 = vmatprep.subr.mxu0 0.0
        %1519 = vmatpush1.msra.mxu0 0.0
        %1520 = vmatprep.subr.mxu0 0.0
        %1521 = vmatpush1.msra.mxu0 0.0
        %1522 = vmatprep.subr.mxu0 0.0
        %1523 = vmatpush1.msra.mxu0 0.0
        %1524 = vmatprep.subr.mxu0 0.0
        %1525 = vmatpush1.msra.mxu0 0.0
        %1526 = vmatprep.subr.mxu0 0.0
        %1527 = vmatpush1.msra.mxu0 0.0
        %1528 = vmatprep.subr.mxu0 0.0
        %1529 = vmatpush1.msra.mxu0 0.0
        %1530 = vmatprep.subr.mxu0 0.0
        %1531 = vmatpush1.msra.mxu0 0.0
        %1532 = vmatprep.subr.mxu0 0.0
        %1533 = vmatpush1.msra.mxu0 0.0
        %1534 = vmatprep.subr.mxu0 0.0
        %1535 = vmatpush1.msra.mxu0 0.0
        %1536 = vmatprep.subr.mxu0 0.0
        %1537 = vmatpush1.msra.mxu0 0.0
        %1538 = vmatprep.subr.mxu0 0.0
        %1539 = vmatpush1.msra.mxu0 0.0
        %1540 = vmatprep.mubr.f32.mxu0 0.0
        %1541 = vmatmul.mubr.f32.gmra.mrb[0].mxu0 %v1474
        %v1542 = vpop.f32.mrb[0].mxu0
        %v1543 = vadd.f32 0.0, %v1542
        %v1544 = vpop.f32.mrb[0].mxu0
        %1545 = vdwg.mxu0
        %1547 = vrot.lane.b32.xlu0 %v1199, 8
        %v1548 = vpop.permute.xlu0 %1547
        %1551 = vrot.lane.b32.xlu0 %v1371, 16
        %v1552 = vpop.permute.xlu0 %1551
        %1555 = vrot.lane.b32.xlu0 %v1543, 24
        %v1556 = vpop.permute.xlu0 %1555
        %v1558 = vsel %vm863, %v1025, %v1548
        %v1559 = vsel %vm943, %v1558, %v1552
        %vm1560 = vcmask 195584
        %v1561 = vsel %vm1560, %v1559, %v1556
        %v1562 = vadd.f32 %v674, %v1561
        %v1563 = vld [vmem:[#allocation17] sm:$0xff]
        %v1564 = vld [vmem:[#allocation17 + $0x8] sm:$0xff]
        %v1565 = vld [vmem:[#allocation17 + $0x10] sm:$0xff]
        %v1566 = vld [vmem:[#allocation17 + $0x18] sm:$0xff]
        %v1567 = vld [vmem:[#allocation19] sm:$0x1]
        %v1569 = vlaneseq
        %v1570 = vshrl.u32 %v1569, 7
        %v1571 = vsub.s32 0, %v1570
        %v1572 = vrot.slane %v1567, %v1571
        %v1575 = vsel %vm603, %v1562, 0
        %1577 = vmatprep.subr.mxu0 0.0
        %1578 = vmatpush1.msra.mxu0 %v1563
        %1579 = vmatprep.subr.mxu0 0.0
        %1580 = vmatpush1.msra.mxu0 %v1564
        %1581 = vmatprep.subr.mxu0 0.0
        %1582 = vmatpush1.msra.mxu0 %v1565
        %1583 = vmatprep.subr.mxu0 0.0
        %1584 = vmatpush1.msra.mxu0 %v1566
        %1585 = vmatprep.subr.mxu0 0.0
        %1586 = vmatpush1.msra.mxu0 0.0
        %1587 = vmatprep.subr.mxu0 0.0
        %1588 = vmatpush1.msra.mxu0 0.0
        %1589 = vmatprep.subr.mxu0 0.0
        %1590 = vmatpush1.msra.mxu0 0.0
        %1591 = vmatprep.subr.mxu0 0.0
        %1592 = vmatpush1.msra.mxu0 0.0
        %1593 = vmatprep.subr.mxu0 0.0
        %1594 = vmatpush1.msra.mxu0 0.0
        %1595 = vmatprep.subr.mxu0 0.0
        %1596 = vmatpush1.msra.mxu0 0.0
        %1597 = vmatprep.subr.mxu0 0.0
        %1598 = vmatpush1.msra.mxu0 0.0
        %1599 = vmatprep.subr.mxu0 0.0
        %1600 = vmatpush1.msra.mxu0 0.0
        %1601 = vmatprep.subr.mxu0 0.0
        %1602 = vmatpush1.msra.mxu0 0.0
        %1603 = vmatprep.subr.mxu0 0.0
        %1604 = vmatpush1.msra.mxu0 0.0
        %1605 = vmatprep.subr.mxu0 0.0
        %1606 = vmatpush1.msra.mxu0 0.0
        %1607 = vmatprep.subr.mxu0 0.0
        %1608 = vmatpush1.msra.mxu0 0.0
        %1609 = vmatprep.subr.mxu0 0.0
        %1610 = vmatpush1.msra.mxu0 0.0
        %1611 = vmatprep.subr.mxu0 0.0
        %1612 = vmatpush1.msra.mxu0 0.0
        %1613 = vmatprep.subr.mxu0 0.0
        %1614 = vmatpush1.msra.mxu0 0.0
        %1615 = vmatprep.subr.mxu0 0.0
        %1616 = vmatpush1.msra.mxu0 0.0
        %1617 = vmatprep.subr.mxu0 0.0
        %1618 = vmatpush1.msra.mxu0 0.0
        %1619 = vmatprep.subr.mxu0 0.0
        %1620 = vmatpush1.msra.mxu0 0.0
        %1621 = vmatprep.subr.mxu0 0.0
        %1622 = vmatpush1.msra.mxu0 0.0
        %1623 = vmatprep.subr.mxu0 0.0
        %1624 = vmatpush1.msra.mxu0 0.0
        %1625 = vmatprep.subr.mxu0 0.0
        %1626 = vmatpush1.msra.mxu0 0.0
        %1627 = vmatprep.subr.mxu0 0.0
        %1628 = vmatpush1.msra.mxu0 0.0
        %1629 = vmatprep.subr.mxu0 0.0
        %1630 = vmatpush1.msra.mxu0 0.0
        %1631 = vmatprep.subr.mxu0 0.0
        %1632 = vmatpush1.msra.mxu0 0.0
        %1633 = vmatprep.subr.mxu0 0.0
        %1634 = vmatpush1.msra.mxu0 0.0
        %1635 = vmatprep.subr.mxu0 0.0
        %1636 = vmatpush1.msra.mxu0 0.0
        %1637 = vmatprep.subr.mxu0 0.0
        %1638 = vmatpush1.msra.mxu0 0.0
        %1639 = vmatprep.subr.mxu0 0.0
        %1640 = vmatpush1.msra.mxu0 0.0
        %1641 = vmatprep.mubr.f32.mxu0 0.0
        %1642 = vmatmul.mubr.f32.gmra.mrb[0].mxu0 %v1575
        %v1643 = vpop.f32.mrb[0].mxu0
        %v1644 = vadd.f32 %v1572, %v1643
        %v1645 = vpop.f32.mrb[0].mxu0
        %1646 = vdwg.mxu0
        %v1647 = vmax.f32 %v1644, 0.0
        %v1648 = vadd.f32 %v1562, %v1647
        %1649 = vst.msk [vmem:[%s586] sm:$0xff] %vm603, %v1648
        %s1650 = sand.u32 %s289, 1
        %s1651 = scalar_lea.sflag [#allocation4], %s1650
        %s1652 = sand.u32 %s289, 1
        %s1653 = smul.addr %s1652, 8
        %s1654 = scalar_lea.vmem [#allocation20], %s1653
        // Predicated region
        $region109: #{tpu_custom_call.1} parent=63 // pred_check
          %p1655 = pneg %p299
        $region110: #{tpu_custom_call.1} parent=63 // pred_check_branch
          %1657 = sbr.rel (%p1655) target = $region112
        $region111: #{tpu_custom_call.1} parent=63 // pred_region
          %s1659 = ssub.s32 128, 128
          %1660 = vsyncadd %s1651, %s1659
          %s1661 = smul.addr %s35, 128
          %s1662 = scalar_lea.hbm %s11, %s1661
          %s1664 = sshll.u32 %s1654, 4
          %s1665 = int_to_ptr.vmem [resolvable:$true] %s1664
          %1667 = dma.vmem_to_hbm [thread:$0]  %s1665, 128, %s1662, %s1651
        $region112: #{tpu_custom_call.1} parent=63 // pred_fallthru
          _
      $region64: #{tpu_custom_call.1} parent=5 // pred_fallthru
        _
      %p1668 = scmp.le.s32.totalorder 2, %s30
      // Predicated region
      $region113: #{tpu_custom_call.1} parent=5 // pred_check
        %p1669 = pneg %p1668
      $region114: #{tpu_custom_call.1} parent=5 // pred_check_branch
        %1671 = sbr.rel (%p1669) target = $region116
      $region115: #{tpu_custom_call.1} parent=5 // pred_region
        %s1672 = ssub.s32 %s30, 2
        // Predicated region
        $region117: #{tpu_custom_call.1} parent=115 // pred_check
          %p1673 = pneg %p305
        $region118: #{tpu_custom_call.1} parent=115 // pred_check_branch
          %1675 = sbr.rel (%p1673) target = $region120
        $region119: #{tpu_custom_call.1} parent=115 // pred_region
          %s1676 = sand.u32 %s290, 1
          %s1677 = scalar_lea.sflag [#allocation4], %s1676
          %s1678 = sand.u32 %s290, 1
          %s1679 = smul.addr %s1678, 8
          %s1680 = scalar_lea.vmem [#allocation20], %s1679
          %1681 = dma.done %s1677, 128
        $region120: #{tpu_custom_call.1} parent=115 // pred_fallthru
          _
      $region116: #{tpu_custom_call.1} parent=5 // pred_fallthru
        _
    $region6: #{tpu_custom_call.1} parent=1 // loop_footer
      %s34 = sadd.s32 1, %s30
    $region7: #{tpu_custom_call.1} parent=1 // loop_footer_branch
      %29 = sbr.rel target = $region3
    $region8: #{tpu_custom_call.1} parent=1 // loop_exit
      _
    %1682 = vsyncpa [#allocation3], 1
    %s1683 = scalar_lea.sflag [#allocation3], 1
    %1684 = vsyncpa %s1683, 1
    %1685 = vsyncpa [#allocation6], 1
    %s1686 = scalar_lea.sflag [#allocation6], 1
    %1687 = vsyncpa %s1686, 1
    %1688 = vsyncpa [#allocation9], 1
    %1689 = vsyncpa [#allocation12], 1
    %1690 = vsyncpa [#allocation15], 1
    %1691 = vsyncpa [#allocation18], 1
    %1692 = vsyncpa [#allocation4], 1
    %s1693 = scalar_lea.sflag [#allocation4], 1
    %1694 = vsyncpa %s1693, 1

</llo_original>
